<compile_context>
chip_gen: v7x
topology: tpu7x:2x2x1
jax: 0.10.0
libtpu: 0.0.40
codegen_flags: <defaults>
</compile_context>

<pallas_src>
import jax
import jax.numpy as jnp
import numpy as np
from jax import lax
from jax.experimental import pallas as pl
from jax.experimental.pallas import tpu as pltpu

HIDDEN = 20


def rnn_net_kernel(gxr_ref, gxz_ref, gxn_ref, h0_ref,
                   whr_ref, whz_ref, whn_ref, bhn_ref, fcw_ref,
                   fcb_ref, alpha_ref, out_ref):
    # gx*_ref : (T, B, H)  precomputed input-gate terms (bias-folded for r/z)
    # h0_ref  : (B, H)
    # wh*_ref : (H, H)     per-gate hidden weights (transposed: h @ whh_g)
    # bhn_ref : (1, H)     hidden bias of the n gate (must stay inside r*)
    # fcw_ref : (H, 1)
    # fcb_ref : (1,)  SMEM scalar
    # alpha   : (1,)  SMEM scalar (PReLU slope)
    T = gxr_ref.shape[0]

    whr = whr_ref[...]
    whz = whz_ref[...]
    whn = whn_ref[...]
    bhn = bhn_ref[...]                                   # (1, H), hoisted load

    def step(t, h):
        r = jax.nn.sigmoid(
            gxr_ref[t] + jnp.dot(h, whr, preferred_element_type=jnp.float32))
        z = jax.nn.sigmoid(
            gxz_ref[t] + jnp.dot(h, whz, preferred_element_type=jnp.float32))
        gn = jnp.dot(h, whn, preferred_element_type=jnp.float32) + bhn
        n = jnp.tanh(gxn_ref[t] + r * gn)
        return n + z * (h - n)                           # == (1-z)*n + z*h

    # T is static and small -> fully unroll the serial recurrence.
    h_last = lax.fori_loop(0, T, step, h0_ref[...], unroll=True)

    y = jnp.dot(h_last, fcw_ref[...],
                preferred_element_type=jnp.float32) + fcb_ref[0]   # (B, 1)
    a = alpha_ref[0]
    out_ref[...] = jnp.where(y >= 0.0, y, a * y)         # PReLU


def rnn_net_forward(x, hidden, params):
    """x: (B, T, 1) float32 (batch_first, like PyTorch); hidden: (1, B, H)."""
    B, T, _ = x.shape
    H = hidden.shape[-1]

    x_tb = jnp.transpose(x[..., 0], (1, 0)).astype(jnp.float32)   # (T, B), no size-1 lane dim
    h0 = hidden[0].astype(jnp.float32)                             # (B, H)

    w_ih = params["w_ih"][:, 0]                                    # (3H,)  input_size == 1
    w_hh = params["w_hh"]                                          # (3H, H)
    b_ih = params["b_ih"]
    b_hh = params["b_hh"]

    wih_r, wih_z, wih_n = w_ih[:H], w_ih[H:2 * H], w_ih[2 * H:]
    bih_r, bih_z, bih_n = b_ih[:H], b_ih[H:2 * H], b_ih[2 * H:]
    bhh_r, bhh_z, bhh_n = b_hh[:H], b_hh[H:2 * H], b_hh[2 * H:]

    # Hoist all h-independent work out of the recurrence (done once here in XLA).
    x3 = x_tb[:, :, None]                                          # (T, B, 1)
    gxr = (x3 * wih_r + (bih_r + bhh_r)).astype(jnp.float32)       # (T, B, H)
    gxz = (x3 * wih_z + (bih_z + bhh_z)).astype(jnp.float32)       # (T, B, H)
    gxn = (x3 * wih_n + bih_n).astype(jnp.float32)                 # (T, B, H)

    # Per-gate hidden weights -> no lane-offset slicing inside the kernel.
    whr = w_hh[:H].T.astype(jnp.float32)                           # (H, H)
    whz = w_hh[H:2 * H].T.astype(jnp.float32)                      # (H, H)
    whn = w_hh[2 * H:].T.astype(jnp.float32)                       # (H, H)
    bhn = bhh_n.reshape(1, H).astype(jnp.float32)                  # (1, H)

    fcw = params["fc_w"].T.astype(jnp.float32)                     # (H, 1)
    fcb = params["fc_b"].reshape(1).astype(jnp.float32)            # (1,)  scalar
    alpha = params["prelu_a"].reshape(1).astype(jnp.float32)       # (1,)  scalar

    vmem = pl.BlockSpec(memory_space=pltpu.MemorySpace.VMEM)
    smem = pl.BlockSpec(memory_space=pltpu.MemorySpace.SMEM)

    out = pl.pallas_call(
        rnn_net_kernel,
        out_shape=jax.ShapeDtypeStruct((B, 1), jnp.float32),
        in_specs=[vmem, vmem, vmem,      # gxr, gxz, gxn
                  vmem,                  # h0
                  vmem, vmem, vmem,      # whr, whz, whn
                  vmem,                  # bhn
                  vmem,                  # fcw
                  smem, smem],           # fcb, alpha (true scalars -> SMEM)
        out_specs=vmem,
    )(gxr, gxz, gxn, h0, whr, whz, whn, bhn, fcw, fcb, alpha)
    return out


def rnn_net_reference(x, hidden, params):
    """Pure-JAX reference with PyTorch GRU/Linear/PReLU semantics."""
    H = hidden.shape[-1]
    h = hidden[0]
    wih, whh = params["w_ih"], params["w_hh"]          # (3H,1), (3H,H)
    bih, bhh = params["b_ih"], params["b_hh"]
    T = x.shape[1]
    for t in range(T):
        x_t = x[:, t, :]                                # (B, 1)
        gx = x_t @ wih.T + bih
        gh = h @ whh.T + bhh
        r = jax.nn.sigmoid(gx[:, :H] + gh[:, :H])
        z = jax.nn.sigmoid(gx[:, H:2 * H] + gh[:, H:2 * H])
        n = jnp.tanh(gx[:, 2 * H:] + r * gh[:, 2 * H:])
        h = (1.0 - z) * n + z * h
    y = h @ params["fc_w"].T + params["fc_b"]
    a = params["prelu_a"][0]
    return jnp.where(y >= 0.0, y, a * y)


def init_params(key, hidden_size=HIDDEN, input_size=1):
    """Deterministic init mirroring PyTorch defaults (uniform(-1/sqrt(H), 1/sqrt(H)))."""
    ks = jax.random.split(key, 7)
    k_gru = 1.0 / np.sqrt(hidden_size)
    k_fc = 1.0 / np.sqrt(hidden_size)
    u = lambda k, shape, b: jax.random.uniform(k, shape, jnp.float32, -b, b)
    return {
        "w_ih": u(ks[0], (3 * hidden_size, input_size), k_gru),
        "w_hh": u(ks[1], (3 * hidden_size, hidden_size), k_gru),
        "b_ih": u(ks[2], (3 * hidden_size,), k_gru),
        "b_hh": u(ks[3], (3 * hidden_size,), k_gru),
        "fc_w": u(ks[4], (1, hidden_size), k_fc),
        "fc_b": u(ks[5], (1,), k_fc),
        "prelu_a": jnp.full((1,), 0.25, jnp.float32),
    }


if __name__ == "__main__":
    B, T, H = 2, 8, HIDDEN
    root = jax.random.PRNGKey(0)
    k_x, k_h, k_p = jax.random.split(root, 3)

    x = jax.random.normal(k_x, (B, T, 1), jnp.float32)        # batch_first sequence of scalars
    hidden = jax.random.normal(k_h, (1, B, H), jnp.float32)   # (num_layers=1, B, H)
    params = init_params(k_p, H)

    out = rnn_net_forward(x, hidden, params)
    out = jax.block_until_ready(out)

    ref = rnn_net_reference(x, hidden, params)
    np.testing.assert_allclose(np.asarray(out), np.asarray(ref), rtol=1e-5, atol=1e-5)
    assert out.shape == (B, 1)
    print("KERNEL_OK")
</pallas_src>

<mosaic_0001>
module attributes {stable_mosaic.version = 11 : i64} {
  func.func @rnn_net_kernel(%arg0: memref<8x2x20xf32, #tpu.memory_space<vmem>>, %arg1: memref<8x2x20xf32, #tpu.memory_space<vmem>>, %arg2: memref<8x2x20xf32, #tpu.memory_space<vmem>>, %arg3: memref<2x20xf32, #tpu.memory_space<vmem>>, %arg4: memref<20x20xf32, #tpu.memory_space<vmem>>, %arg5: memref<20x20xf32, #tpu.memory_space<vmem>>, %arg6: memref<20x20xf32, #tpu.memory_space<vmem>>, %arg7: memref<1x20xf32, #tpu.memory_space<vmem>>, %arg8: memref<20x1xf32, #tpu.memory_space<vmem>>, %arg9: memref<1xf32, #tpu.memory_space<smem>>, %arg10: memref<1xf32, #tpu.memory_space<smem>>, %arg11: memref<2x1xf32, #tpu.memory_space<vmem>>) attributes {dimension_semantics = [], scalar_prefetch = 0 : i64, scratch_operands = 0 : i64, tpu.core_type = #tpu.core_type<tc>} {
    %c0 = arith.constant 0 : index
    %c0_0 = arith.constant 0 : index
    %0 = vector.load %arg4[%c0, %c0_0] : memref<20x20xf32, #tpu.memory_space<vmem>>, vector<20x20xf32>
    %c0_1 = arith.constant 0 : index
    %c0_2 = arith.constant 0 : index
    %1 = vector.load %arg5[%c0_1, %c0_2] : memref<20x20xf32, #tpu.memory_space<vmem>>, vector<20x20xf32>
    %c0_3 = arith.constant 0 : index
    %c0_4 = arith.constant 0 : index
    %2 = vector.load %arg6[%c0_3, %c0_4] : memref<20x20xf32, #tpu.memory_space<vmem>>, vector<20x20xf32>
    %c0_5 = arith.constant 0 : index
    %c0_6 = arith.constant 0 : index
    %3 = vector.load %arg7[%c0_5, %c0_6] : memref<1x20xf32, #tpu.memory_space<vmem>>, vector<1x20xf32>
    %c0_7 = arith.constant 0 : index
    %c0_8 = arith.constant 0 : index
    %4 = vector.load %arg3[%c0_7, %c0_8] : memref<2x20xf32, #tpu.memory_space<vmem>>, vector<2x20xf32>
    %c0_i32 = arith.constant 0 : i32
    %5 = arith.index_cast %c0_i32 : i32 to index
    %c0_9 = arith.constant 0 : index
    %c0_10 = arith.constant 0 : index
    %6 = vector.load %arg0[%5, %c0_9, %c0_10] : memref<8x2x20xf32, #tpu.memory_space<vmem>>, vector<1x2x20xf32>
    %7 = vector.shape_cast %6 : vector<1x2x20xf32> to vector<2x20xf32>
    %cst = arith.constant dense<0.000000e+00> : vector<2x20xf32>
    %8 = tpu.matmul %4, %0, %cst {dimension_numbers = #tpu.dot_dimension_numbers<[1], [0], [0], [1], [0, 0, 1, 1], [], []>} : vector<2x20xf32>, vector<20x20xf32>, vector<2x20xf32> -> vector<2x20xf32>
    %9 = arith.addf %7, %8 : vector<2x20xf32>
    %10 = arith.negf %9 : vector<2x20xf32>
    %11 = math.exp %10 : vector<2x20xf32>
    %cst_11 = arith.constant 1.000000e+00 : f32
    %12 = vector.broadcast %cst_11 : f32 to vector<2x20xf32>
    %13 = arith.addf %12, %11 : vector<2x20xf32>
    %14 = arith.divf %12, %13 : vector<2x20xf32>
    %15 = arith.index_cast %c0_i32 : i32 to index
    %c0_12 = arith.constant 0 : index
    %c0_13 = arith.constant 0 : index
    %16 = vector.load %arg1[%15, %c0_12, %c0_13] : memref<8x2x20xf32, #tpu.memory_space<vmem>>, vector<1x2x20xf32>
    %17 = vector.shape_cast %16 : vector<1x2x20xf32> to vector<2x20xf32>
    %cst_14 = arith.constant dense<0.000000e+00> : vector<2x20xf32>
    %18 = tpu.matmul %4, %1, %cst_14 {dimension_numbers = #tpu.dot_dimension_numbers<[1], [0], [0], [1], [0, 0, 1, 1], [], []>} : vector<2x20xf32>, vector<20x20xf32>, vector<2x20xf32> -> vector<2x20xf32>
    %19 = arith.addf %17, %18 : vector<2x20xf32>
    %20 = arith.negf %19 : vector<2x20xf32>
    %21 = math.exp %20 : vector<2x20xf32>
    %cst_15 = arith.constant 1.000000e+00 : f32
    %22 = vector.broadcast %cst_15 : f32 to vector<2x20xf32>
    %23 = arith.addf %22, %21 : vector<2x20xf32>
    %24 = arith.divf %22, %23 : vector<2x20xf32>
    %cst_16 = arith.constant dense<0.000000e+00> : vector<2x20xf32>
    %25 = tpu.matmul %4, %2, %cst_16 {dimension_numbers = #tpu.dot_dimension_numbers<[1], [0], [0], [1], [0, 0, 1, 1], [], []>} : vector<2x20xf32>, vector<20x20xf32>, vector<2x20xf32> -> vector<2x20xf32>
    %26 = vector.broadcast %3 : vector<1x20xf32> to vector<2x20xf32>
    %27 = arith.addf %25, %26 : vector<2x20xf32>
    %28 = arith.index_cast %c0_i32 : i32 to index
    %c0_17 = arith.constant 0 : index
    %c0_18 = arith.constant 0 : index
    %29 = vector.load %arg2[%28, %c0_17, %c0_18] : memref<8x2x20xf32, #tpu.memory_space<vmem>>, vector<1x2x20xf32>
    %30 = vector.shape_cast %29 : vector<1x2x20xf32> to vector<2x20xf32>
    %31 = arith.mulf %14, %27 : vector<2x20xf32>
    %32 = arith.addf %30, %31 : vector<2x20xf32>
    %33 = math.tanh %32 : vector<2x20xf32>
    %34 = arith.subf %4, %33 : vector<2x20xf32>
    %35 = arith.mulf %24, %34 : vector<2x20xf32>
    %36 = arith.addf %33, %35 : vector<2x20xf32>
    %c1_i32 = arith.constant 1 : i32
    %37 = arith.index_cast %c1_i32 : i32 to index
    %c0_19 = arith.constant 0 : index
    %c0_20 = arith.constant 0 : index
    %38 = vector.load %arg0[%37, %c0_19, %c0_20] : memref<8x2x20xf32, #tpu.memory_space<vmem>>, vector<1x2x20xf32>
    %39 = vector.shape_cast %38 : vector<1x2x20xf32> to vector<2x20xf32>
    %cst_21 = arith.constant dense<0.000000e+00> : vector<2x20xf32>
    %40 = tpu.matmul %36, %0, %cst_21 {dimension_numbers = #tpu.dot_dimension_numbers<[1], [0], [0], [1], [0, 0, 1, 1], [], []>} : vector<2x20xf32>, vector<20x20xf32>, vector<2x20xf32> -> vector<2x20xf32>
    %41 = arith.addf %39, %40 : vector<2x20xf32>
    %42 = arith.negf %41 : vector<2x20xf32>
    %43 = math.exp %42 : vector<2x20xf32>
    %cst_22 = arith.constant 1.000000e+00 : f32
    %44 = vector.broadcast %cst_22 : f32 to vector<2x20xf32>
    %45 = arith.addf %44, %43 : vector<2x20xf32>
    %46 = arith.divf %44, %45 : vector<2x20xf32>
    %47 = arith.index_cast %c1_i32 : i32 to index
    %c0_23 = arith.constant 0 : index
    %c0_24 = arith.constant 0 : index
    %48 = vector.load %arg1[%47, %c0_23, %c0_24] : memref<8x2x20xf32, #tpu.memory_space<vmem>>, vector<1x2x20xf32>
    %49 = vector.shape_cast %48 : vector<1x2x20xf32> to vector<2x20xf32>
    %cst_25 = arith.constant dense<0.000000e+00> : vector<2x20xf32>
    %50 = tpu.matmul %36, %1, %cst_25 {dimension_numbers = #tpu.dot_dimension_numbers<[1], [0], [0], [1], [0, 0, 1, 1], [], []>} : vector<2x20xf32>, vector<20x20xf32>, vector<2x20xf32> -> vector<2x20xf32>
    %51 = arith.addf %49, %50 : vector<2x20xf32>
    %52 = arith.negf %51 : vector<2x20xf32>
    %53 = math.exp %52 : vector<2x20xf32>
    %cst_26 = arith.constant 1.000000e+00 : f32
    %54 = vector.broadcast %cst_26 : f32 to vector<2x20xf32>
    %55 = arith.addf %54, %53 : vector<2x20xf32>
    %56 = arith.divf %54, %55 : vector<2x20xf32>
    %cst_27 = arith.constant dense<0.000000e+00> : vector<2x20xf32>
    %57 = tpu.matmul %36, %2, %cst_27 {dimension_numbers = #tpu.dot_dimension_numbers<[1], [0], [0], [1], [0, 0, 1, 1], [], []>} : vector<2x20xf32>, vector<20x20xf32>, vector<2x20xf32> -> vector<2x20xf32>
    %58 = vector.broadcast %3 : vector<1x20xf32> to vector<2x20xf32>
    %59 = arith.addf %57, %58 : vector<2x20xf32>
    %60 = arith.index_cast %c1_i32 : i32 to index
    %c0_28 = arith.constant 0 : index
    %c0_29 = arith.constant 0 : index
    %61 = vector.load %arg2[%60, %c0_28, %c0_29] : memref<8x2x20xf32, #tpu.memory_space<vmem>>, vector<1x2x20xf32>
    %62 = vector.shape_cast %61 : vector<1x2x20xf32> to vector<2x20xf32>
    %63 = arith.mulf %46, %59 : vector<2x20xf32>
    %64 = arith.addf %62, %63 : vector<2x20xf32>
    %65 = math.tanh %64 : vector<2x20xf32>
    %66 = arith.subf %36, %65 : vector<2x20xf32>
    %67 = arith.mulf %56, %66 : vector<2x20xf32>
    %68 = arith.addf %65, %67 : vector<2x20xf32>
    %c2_i32 = arith.constant 2 : i32
    %69 = arith.index_cast %c2_i32 : i32 to index
    %c0_30 = arith.constant 0 : index
    %c0_31 = arith.constant 0 : index
    %70 = vector.load %arg0[%69, %c0_30, %c0_31] : memref<8x2x20xf32, #tpu.memory_space<vmem>>, vector<1x2x20xf32>
    %71 = vector.shape_cast %70 : vector<1x2x20xf32> to vector<2x20xf32>
    %cst_32 = arith.constant dense<0.000000e+00> : vector<2x20xf32>
    %72 = tpu.matmul %68, %0, %cst_32 {dimension_numbers = #tpu.dot_dimension_numbers<[1], [0], [0], [1], [0, 0, 1, 1], [], []>} : vector<2x20xf32>, vector<20x20xf32>, vector<2x20xf32> -> vector<2x20xf32>
    %73 = arith.addf %71, %72 : vector<2x20xf32>
    %74 = arith.negf %73 : vector<2x20xf32>
    %75 = math.exp %74 : vector<2x20xf32>
    %cst_33 = arith.constant 1.000000e+00 : f32
    %76 = vector.broadcast %cst_33 : f32 to vector<2x20xf32>
    %77 = arith.addf %76, %75 : vector<2x20xf32>
    %78 = arith.divf %76, %77 : vector<2x20xf32>
    %79 = arith.index_cast %c2_i32 : i32 to index
    %c0_34 = arith.constant 0 : index
    %c0_35 = arith.constant 0 : index
    %80 = vector.load %arg1[%79, %c0_34, %c0_35] : memref<8x2x20xf32, #tpu.memory_space<vmem>>, vector<1x2x20xf32>
    %81 = vector.shape_cast %80 : vector<1x2x20xf32> to vector<2x20xf32>
    %cst_36 = arith.constant dense<0.000000e+00> : vector<2x20xf32>
    %82 = tpu.matmul %68, %1, %cst_36 {dimension_numbers = #tpu.dot_dimension_numbers<[1], [0], [0], [1], [0, 0, 1, 1], [], []>} : vector<2x20xf32>, vector<20x20xf32>, vector<2x20xf32> -> vector<2x20xf32>
    %83 = arith.addf %81, %82 : vector<2x20xf32>
    %84 = arith.negf %83 : vector<2x20xf32>
    %85 = math.exp %84 : vector<2x20xf32>
    %cst_37 = arith.constant 1.000000e+00 : f32
    %86 = vector.broadcast %cst_37 : f32 to vector<2x20xf32>
    %87 = arith.addf %86, %85 : vector<2x20xf32>
    %88 = arith.divf %86, %87 : vector<2x20xf32>
    %cst_38 = arith.constant dense<0.000000e+00> : vector<2x20xf32>
    %89 = tpu.matmul %68, %2, %cst_38 {dimension_numbers = #tpu.dot_dimension_numbers<[1], [0], [0], [1], [0, 0, 1, 1], [], []>} : vector<2x20xf32>, vector<20x20xf32>, vector<2x20xf32> -> vector<2x20xf32>
    %90 = vector.broadcast %3 : vector<1x20xf32> to vector<2x20xf32>
    %91 = arith.addf %89, %90 : vector<2x20xf32>
    %92 = arith.index_cast %c2_i32 : i32 to index
    %c0_39 = arith.constant 0 : index
    %c0_40 = arith.constant 0 : index
    %93 = vector.load %arg2[%92, %c0_39, %c0_40] : memref<8x2x20xf32, #tpu.memory_space<vmem>>, vector<1x2x20xf32>
    %94 = vector.shape_cast %93 : vector<1x2x20xf32> to vector<2x20xf32>
    %95 = arith.mulf %78, %91 : vector<2x20xf32>
    %96 = arith.addf %94, %95 : vector<2x20xf32>
    %97 = math.tanh %96 : vector<2x20xf32>
    %98 = arith.subf %68, %97 : vector<2x20xf32>
    %99 = arith.mulf %88, %98 : vector<2x20xf32>
    %100 = arith.addf %97, %99 : vector<2x20xf32>
    %c3_i32 = arith.constant 3 : i32
    %101 = arith.index_cast %c3_i32 : i32 to index
    %c0_41 = arith.constant 0 : index
    %c0_42 = arith.constant 0 : index
    %102 = vector.load %arg0[%101, %c0_41, %c0_42] : memref<8x2x20xf32, #tpu.memory_space<vmem>>, vector<1x2x20xf32>
    %103 = vector.shape_cast %102 : vector<1x2x20xf32> to vector<2x20xf32>
    %cst_43 = arith.constant dense<0.000000e+00> : vector<2x20xf32>
    %104 = tpu.matmul %100, %0, %cst_43 {dimension_numbers = #tpu.dot_dimension_numbers<[1], [0], [0], [1], [0, 0, 1, 1], [], []>} : vector<2x20xf32>, vector<20x20xf32>, vector<2x20xf32> -> vector<2x20xf32>
    %105 = arith.addf %103, %104 : vector<2x20xf32>
    %106 = arith.negf %105 : vector<2x20xf32>
    %107 = math.exp %106 : vector<2x20xf32>
    %cst_44 = arith.constant 1.000000e+00 : f32
    %108 = vector.broadcast %cst_44 : f32 to vector<2x20xf32>
    %109 = arith.addf %108, %107 : vector<2x20xf32>
    %110 = arith.divf %108, %109 : vector<2x20xf32>
    %111 = arith.index_cast %c3_i32 : i32 to index
    %c0_45 = arith.constant 0 : index
    %c0_46 = arith.constant 0 : index
    %112 = vector.load %arg1[%111, %c0_45, %c0_46] : memref<8x2x20xf32, #tpu.memory_space<vmem>>, vector<1x2x20xf32>
    %113 = vector.shape_cast %112 : vector<1x2x20xf32> to vector<2x20xf32>
    %cst_47 = arith.constant dense<0.000000e+00> : vector<2x20xf32>
    %114 = tpu.matmul %100, %1, %cst_47 {dimension_numbers = #tpu.dot_dimension_numbers<[1], [0], [0], [1], [0, 0, 1, 1], [], []>} : vector<2x20xf32>, vector<20x20xf32>, vector<2x20xf32> -> vector<2x20xf32>
    %115 = arith.addf %113, %114 : vector<2x20xf32>
    %116 = arith.negf %115 : vector<2x20xf32>
    %117 = math.exp %116 : vector<2x20xf32>
    %cst_48 = arith.constant 1.000000e+00 : f32
    %118 = vector.broadcast %cst_48 : f32 to vector<2x20xf32>
    %119 = arith.addf %118, %117 : vector<2x20xf32>
    %120 = arith.divf %118, %119 : vector<2x20xf32>
    %cst_49 = arith.constant dense<0.000000e+00> : vector<2x20xf32>
    %121 = tpu.matmul %100, %2, %cst_49 {dimension_numbers = #tpu.dot_dimension_numbers<[1], [0], [0], [1], [0, 0, 1, 1], [], []>} : vector<2x20xf32>, vector<20x20xf32>, vector<2x20xf32> -> vector<2x20xf32>
    %122 = vector.broadcast %3 : vector<1x20xf32> to vector<2x20xf32>
    %123 = arith.addf %121, %122 : vector<2x20xf32>
    %124 = arith.index_cast %c3_i32 : i32 to index
    %c0_50 = arith.constant 0 : index
    %c0_51 = arith.constant 0 : index
    %125 = vector.load %arg2[%124, %c0_50, %c0_51] : memref<8x2x20xf32, #tpu.memory_space<vmem>>, vector<1x2x20xf32>
    %126 = vector.shape_cast %125 : vector<1x2x20xf32> to vector<2x20xf32>
    %127 = arith.mulf %110, %123 : vector<2x20xf32>
    %128 = arith.addf %126, %127 : vector<2x20xf32>
    %129 = math.tanh %128 : vector<2x20xf32>
    %130 = arith.subf %100, %129 : vector<2x20xf32>
    %131 = arith.mulf %120, %130 : vector<2x20xf32>
    %132 = arith.addf %129, %131 : vector<2x20xf32>
    %c4_i32 = arith.constant 4 : i32
    %133 = arith.index_cast %c4_i32 : i32 to index
    %c0_52 = arith.constant 0 : index
    %c0_53 = arith.constant 0 : index
    %134 = vector.load %arg0[%133, %c0_52, %c0_53] : memref<8x2x20xf32, #tpu.memory_space<vmem>>, vector<1x2x20xf32>
    %135 = vector.shape_cast %134 : vector<1x2x20xf32> to vector<2x20xf32>
    %cst_54 = arith.constant dense<0.000000e+00> : vector<2x20xf32>
    %136 = tpu.matmul %132, %0, %cst_54 {dimension_numbers = #tpu.dot_dimension_numbers<[1], [0], [0], [1], [0, 0, 1, 1], [], []>} : vector<2x20xf32>, vector<20x20xf32>, vector<2x20xf32> -> vector<2x20xf32>
    %137 = arith.addf %135, %136 : vector<2x20xf32>
    %138 = arith.negf %137 : vector<2x20xf32>
    %139 = math.exp %138 : vector<2x20xf32>
    %cst_55 = arith.constant 1.000000e+00 : f32
    %140 = vector.broadcast %cst_55 : f32 to vector<2x20xf32>
    %141 = arith.addf %140, %139 : vector<2x20xf32>
    %142 = arith.divf %140, %141 : vector<2x20xf32>
    %143 = arith.index_cast %c4_i32 : i32 to index
    %c0_56 = arith.constant 0 : index
    %c0_57 = arith.constant 0 : index
    %144 = vector.load %arg1[%143, %c0_56, %c0_57] : memref<8x2x20xf32, #tpu.memory_space<vmem>>, vector<1x2x20xf32>
    %145 = vector.shape_cast %144 : vector<1x2x20xf32> to vector<2x20xf32>
    %cst_58 = arith.constant dense<0.000000e+00> : vector<2x20xf32>
    %146 = tpu.matmul %132, %1, %cst_58 {dimension_numbers = #tpu.dot_dimension_numbers<[1], [0], [0], [1], [0, 0, 1, 1], [], []>} : vector<2x20xf32>, vector<20x20xf32>, vector<2x20xf32> -> vector<2x20xf32>
    %147 = arith.addf %145, %146 : vector<2x20xf32>
    %148 = arith.negf %147 : vector<2x20xf32>
    %149 = math.exp %148 : vector<2x20xf32>
    %cst_59 = arith.constant 1.000000e+00 : f32
    %150 = vector.broadcast %cst_59 : f32 to vector<2x20xf32>
    %151 = arith.addf %150, %149 : vector<2x20xf32>
    %152 = arith.divf %150, %151 : vector<2x20xf32>
    %cst_60 = arith.constant dense<0.000000e+00> : vector<2x20xf32>
    %153 = tpu.matmul %132, %2, %cst_60 {dimension_numbers = #tpu.dot_dimension_numbers<[1], [0], [0], [1], [0, 0, 1, 1], [], []>} : vector<2x20xf32>, vector<20x20xf32>, vector<2x20xf32> -> vector<2x20xf32>
    %154 = vector.broadcast %3 : vector<1x20xf32> to vector<2x20xf32>
    %155 = arith.addf %153, %154 : vector<2x20xf32>
    %156 = arith.index_cast %c4_i32 : i32 to index
    %c0_61 = arith.constant 0 : index
    %c0_62 = arith.constant 0 : index
    %157 = vector.load %arg2[%156, %c0_61, %c0_62] : memref<8x2x20xf32, #tpu.memory_space<vmem>>, vector<1x2x20xf32>
    %158 = vector.shape_cast %157 : vector<1x2x20xf32> to vector<2x20xf32>
    %159 = arith.mulf %142, %155 : vector<2x20xf32>
    %160 = arith.addf %158, %159 : vector<2x20xf32>
    %161 = math.tanh %160 : vector<2x20xf32>
    %162 = arith.subf %132, %161 : vector<2x20xf32>
    %163 = arith.mulf %152, %162 : vector<2x20xf32>
    %164 = arith.addf %161, %163 : vector<2x20xf32>
    %c5_i32 = arith.constant 5 : i32
    %165 = arith.index_cast %c5_i32 : i32 to index
    %c0_63 = arith.constant 0 : index
    %c0_64 = arith.constant 0 : index
    %166 = vector.load %arg0[%165, %c0_63, %c0_64] : memref<8x2x20xf32, #tpu.memory_space<vmem>>, vector<1x2x20xf32>
    %167 = vector.shape_cast %166 : vector<1x2x20xf32> to vector<2x20xf32>
    %cst_65 = arith.constant dense<0.000000e+00> : vector<2x20xf32>
    %168 = tpu.matmul %164, %0, %cst_65 {dimension_numbers = #tpu.dot_dimension_numbers<[1], [0], [0], [1], [0, 0, 1, 1], [], []>} : vector<2x20xf32>, vector<20x20xf32>, vector<2x20xf32> -> vector<2x20xf32>
    %169 = arith.addf %167, %168 : vector<2x20xf32>
    %170 = arith.negf %169 : vector<2x20xf32>
    %171 = math.exp %170 : vector<2x20xf32>
    %cst_66 = arith.constant 1.000000e+00 : f32
    %172 = vector.broadcast %cst_66 : f32 to vector<2x20xf32>
    %173 = arith.addf %172, %171 : vector<2x20xf32>
    %174 = arith.divf %172, %173 : vector<2x20xf32>
    %175 = arith.index_cast %c5_i32 : i32 to index
    %c0_67 = arith.constant 0 : index
    %c0_68 = arith.constant 0 : index
    %176 = vector.load %arg1[%175, %c0_67, %c0_68] : memref<8x2x20xf32, #tpu.memory_space<vmem>>, vector<1x2x20xf32>
    %177 = vector.shape_cast %176 : vector<1x2x20xf32> to vector<2x20xf32>
    %cst_69 = arith.constant dense<0.000000e+00> : vector<2x20xf32>
    %178 = tpu.matmul %164, %1, %cst_69 {dimension_numbers = #tpu.dot_dimension_numbers<[1], [0], [0], [1], [0, 0, 1, 1], [], []>} : vector<2x20xf32>, vector<20x20xf32>, vector<2x20xf32> -> vector<2x20xf32>
    %179 = arith.addf %177, %178 : vector<2x20xf32>
    %180 = arith.negf %179 : vector<2x20xf32>
    %181 = math.exp %180 : vector<2x20xf32>
    %cst_70 = arith.constant 1.000000e+00 : f32
    %182 = vector.broadcast %cst_70 : f32 to vector<2x20xf32>
    %183 = arith.addf %182, %181 : vector<2x20xf32>
    %184 = arith.divf %182, %183 : vector<2x20xf32>
    %cst_71 = arith.constant dense<0.000000e+00> : vector<2x20xf32>
    %185 = tpu.matmul %164, %2, %cst_71 {dimension_numbers = #tpu.dot_dimension_numbers<[1], [0], [0], [1], [0, 0, 1, 1], [], []>} : vector<2x20xf32>, vector<20x20xf32>, vector<2x20xf32> -> vector<2x20xf32>
    %186 = vector.broadcast %3 : vector<1x20xf32> to vector<2x20xf32>
    %187 = arith.addf %185, %186 : vector<2x20xf32>
    %188 = arith.index_cast %c5_i32 : i32 to index
    %c0_72 = arith.constant 0 : index
    %c0_73 = arith.constant 0 : index
    %189 = vector.load %arg2[%188, %c0_72, %c0_73] : memref<8x2x20xf32, #tpu.memory_space<vmem>>, vector<1x2x20xf32>
    %190 = vector.shape_cast %189 : vector<1x2x20xf32> to vector<2x20xf32>
    %191 = arith.mulf %174, %187 : vector<2x20xf32>
    %192 = arith.addf %190, %191 : vector<2x20xf32>
    %193 = math.tanh %192 : vector<2x20xf32>
    %194 = arith.subf %164, %193 : vector<2x20xf32>
    %195 = arith.mulf %184, %194 : vector<2x20xf32>
    %196 = arith.addf %193, %195 : vector<2x20xf32>
    %c6_i32 = arith.constant 6 : i32
    %197 = arith.index_cast %c6_i32 : i32 to index
    %c0_74 = arith.constant 0 : index
    %c0_75 = arith.constant 0 : index
    %198 = vector.load %arg0[%197, %c0_74, %c0_75] : memref<8x2x20xf32, #tpu.memory_space<vmem>>, vector<1x2x20xf32>
    %199 = vector.shape_cast %198 : vector<1x2x20xf32> to vector<2x20xf32>
    %cst_76 = arith.constant dense<0.000000e+00> : vector<2x20xf32>
    %200 = tpu.matmul %196, %0, %cst_76 {dimension_numbers = #tpu.dot_dimension_numbers<[1], [0], [0], [1], [0, 0, 1, 1], [], []>} : vector<2x20xf32>, vector<20x20xf32>, vector<2x20xf32> -> vector<2x20xf32>
    %201 = arith.addf %199, %200 : vector<2x20xf32>
    %202 = arith.negf %201 : vector<2x20xf32>
    %203 = math.exp %202 : vector<2x20xf32>
    %cst_77 = arith.constant 1.000000e+00 : f32
    %204 = vector.broadcast %cst_77 : f32 to vector<2x20xf32>
    %205 = arith.addf %204, %203 : vector<2x20xf32>
    %206 = arith.divf %204, %205 : vector<2x20xf32>
    %207 = arith.index_cast %c6_i32 : i32 to index
    %c0_78 = arith.constant 0 : index
    %c0_79 = arith.constant 0 : index
    %208 = vector.load %arg1[%207, %c0_78, %c0_79] : memref<8x2x20xf32, #tpu.memory_space<vmem>>, vector<1x2x20xf32>
    %209 = vector.shape_cast %208 : vector<1x2x20xf32> to vector<2x20xf32>
    %cst_80 = arith.constant dense<0.000000e+00> : vector<2x20xf32>
    %210 = tpu.matmul %196, %1, %cst_80 {dimension_numbers = #tpu.dot_dimension_numbers<[1], [0], [0], [1], [0, 0, 1, 1], [], []>} : vector<2x20xf32>, vector<20x20xf32>, vector<2x20xf32> -> vector<2x20xf32>
    %211 = arith.addf %209, %210 : vector<2x20xf32>
    %212 = arith.negf %211 : vector<2x20xf32>
    %213 = math.exp %212 : vector<2x20xf32>
    %cst_81 = arith.constant 1.000000e+00 : f32
    %214 = vector.broadcast %cst_81 : f32 to vector<2x20xf32>
    %215 = arith.addf %214, %213 : vector<2x20xf32>
    %216 = arith.divf %214, %215 : vector<2x20xf32>
    %cst_82 = arith.constant dense<0.000000e+00> : vector<2x20xf32>
    %217 = tpu.matmul %196, %2, %cst_82 {dimension_numbers = #tpu.dot_dimension_numbers<[1], [0], [0], [1], [0, 0, 1, 1], [], []>} : vector<2x20xf32>, vector<20x20xf32>, vector<2x20xf32> -> vector<2x20xf32>
    %218 = vector.broadcast %3 : vector<1x20xf32> to vector<2x20xf32>
    %219 = arith.addf %217, %218 : vector<2x20xf32>
    %220 = arith.index_cast %c6_i32 : i32 to index
    %c0_83 = arith.constant 0 : index
    %c0_84 = arith.constant 0 : index
    %221 = vector.load %arg2[%220, %c0_83, %c0_84] : memref<8x2x20xf32, #tpu.memory_space<vmem>>, vector<1x2x20xf32>
    %222 = vector.shape_cast %221 : vector<1x2x20xf32> to vector<2x20xf32>
    %223 = arith.mulf %206, %219 : vector<2x20xf32>
    %224 = arith.addf %222, %223 : vector<2x20xf32>
    %225 = math.tanh %224 : vector<2x20xf32>
    %226 = arith.subf %196, %225 : vector<2x20xf32>
    %227 = arith.mulf %216, %226 : vector<2x20xf32>
    %228 = arith.addf %225, %227 : vector<2x20xf32>
    %c7_i32 = arith.constant 7 : i32
    %229 = arith.index_cast %c7_i32 : i32 to index
    %c0_85 = arith.constant 0 : index
    %c0_86 = arith.constant 0 : index
    %230 = vector.load %arg0[%229, %c0_85, %c0_86] : memref<8x2x20xf32, #tpu.memory_space<vmem>>, vector<1x2x20xf32>
    %231 = vector.shape_cast %230 : vector<1x2x20xf32> to vector<2x20xf32>
    %cst_87 = arith.constant dense<0.000000e+00> : vector<2x20xf32>
    %232 = tpu.matmul %228, %0, %cst_87 {dimension_numbers = #tpu.dot_dimension_numbers<[1], [0], [0], [1], [0, 0, 1, 1], [], []>} : vector<2x20xf32>, vector<20x20xf32>, vector<2x20xf32> -> vector<2x20xf32>
    %233 = arith.addf %231, %232 : vector<2x20xf32>
    %234 = arith.negf %233 : vector<2x20xf32>
    %235 = math.exp %234 : vector<2x20xf32>
    %cst_88 = arith.constant 1.000000e+00 : f32
    %236 = vector.broadcast %cst_88 : f32 to vector<2x20xf32>
    %237 = arith.addf %236, %235 : vector<2x20xf32>
    %238 = arith.divf %236, %237 : vector<2x20xf32>
    %239 = arith.index_cast %c7_i32 : i32 to index
    %c0_89 = arith.constant 0 : index
    %c0_90 = arith.constant 0 : index
    %240 = vector.load %arg1[%239, %c0_89, %c0_90] : memref<8x2x20xf32, #tpu.memory_space<vmem>>, vector<1x2x20xf32>
    %241 = vector.shape_cast %240 : vector<1x2x20xf32> to vector<2x20xf32>
    %cst_91 = arith.constant dense<0.000000e+00> : vector<2x20xf32>
    %242 = tpu.matmul %228, %1, %cst_91 {dimension_numbers = #tpu.dot_dimension_numbers<[1], [0], [0], [1], [0, 0, 1, 1], [], []>} : vector<2x20xf32>, vector<20x20xf32>, vector<2x20xf32> -> vector<2x20xf32>
    %243 = arith.addf %241, %242 : vector<2x20xf32>
    %244 = arith.negf %243 : vector<2x20xf32>
    %245 = math.exp %244 : vector<2x20xf32>
    %cst_92 = arith.constant 1.000000e+00 : f32
    %246 = vector.broadcast %cst_92 : f32 to vector<2x20xf32>
    %247 = arith.addf %246, %245 : vector<2x20xf32>
    %248 = arith.divf %246, %247 : vector<2x20xf32>
    %cst_93 = arith.constant dense<0.000000e+00> : vector<2x20xf32>
    %249 = tpu.matmul %228, %2, %cst_93 {dimension_numbers = #tpu.dot_dimension_numbers<[1], [0], [0], [1], [0, 0, 1, 1], [], []>} : vector<2x20xf32>, vector<20x20xf32>, vector<2x20xf32> -> vector<2x20xf32>
    %250 = vector.broadcast %3 : vector<1x20xf32> to vector<2x20xf32>
    %251 = arith.addf %249, %250 : vector<2x20xf32>
    %252 = arith.index_cast %c7_i32 : i32 to index
    %c0_94 = arith.constant 0 : index
    %c0_95 = arith.constant 0 : index
    %253 = vector.load %arg2[%252, %c0_94, %c0_95] : memref<8x2x20xf32, #tpu.memory_space<vmem>>, vector<1x2x20xf32>
    %254 = vector.shape_cast %253 : vector<1x2x20xf32> to vector<2x20xf32>
    %255 = arith.mulf %238, %251 : vector<2x20xf32>
    %256 = arith.addf %254, %255 : vector<2x20xf32>
    %257 = math.tanh %256 : vector<2x20xf32>
    %258 = arith.subf %228, %257 : vector<2x20xf32>
    %259 = arith.mulf %248, %258 : vector<2x20xf32>
    %260 = arith.addf %257, %259 : vector<2x20xf32>
    %c8_i32 = arith.constant 8 : i32
    %c0_96 = arith.constant 0 : index
    %c0_97 = arith.constant 0 : index
    %261 = vector.load %arg8[%c0_96, %c0_97] : memref<20x1xf32, #tpu.memory_space<vmem>>, vector<20x1xf32>
    %cst_98 = arith.constant dense<0.000000e+00> : vector<2x1xf32>
    %262 = tpu.matmul %260, %261, %cst_98 {dimension_numbers = #tpu.dot_dimension_numbers<[1], [0], [0], [1], [0, 0, 1, 1], [], []>} : vector<2x20xf32>, vector<20x1xf32>, vector<2x1xf32> -> vector<2x1xf32>
    %c0_99 = arith.constant 0 : index
    %263 = memref.load %arg9[%c0_99] : memref<1xf32, #tpu.memory_space<smem>>
    %264 = vector.broadcast %263 : f32 to vector<2x1xf32>
    %265 = arith.addf %262, %264 : vector<2x1xf32>
    %c0_100 = arith.constant 0 : index
    %266 = memref.load %arg10[%c0_100] : memref<1xf32, #tpu.memory_space<smem>>
    %cst_101 = arith.constant 0.000000e+00 : f32
    %267 = vector.broadcast %cst_101 : f32 to vector<2x1xf32>
    %268 = arith.cmpf oge, %265, %267 : vector<2x1xf32>
    %269 = vector.broadcast %266 : f32 to vector<2x1xf32>
    %270 = arith.mulf %269, %265 : vector<2x1xf32>
    %271 = arith.select %268, %265, %270 : vector<2x1xi1>, vector<2x1xf32>
    %c0_102 = arith.constant 0 : index
    %c0_103 = arith.constant 0 : index
    %272 = vector.load %arg11[%c0_102, %c0_103] : memref<2x1xf32, #tpu.memory_space<vmem>>, vector<2x1xf32>
    tpu.vector_store %arg11[%c0_102, %c0_103], %271 {strides = array<i32>} : memref<2x1xf32, #tpu.memory_space<vmem>>, vector<2x1xf32>,
    return
  }
}

</mosaic_0001>

<llo_original>
// kernel: tpu_custom_call.1
$region0: #{tpu_custom_call.1}
  #allocation0 [shape = 'u32[]', space=smem, size = 0x4, offset = 0x4, fixed_abs, tag = 'smem constant byte address 0x4 - core index']
  #allocation1 [shape = 'u32[144,128]{1,0:T(1,128)}', space=vmem, size = 0x12000, scoped, tag = 'internal scratch']
  #allocation2 [shape = 'f32[1]{0:T(128)S(6)}', space=smem, size = 0x200, scoped, tag = 'scoped memory for tpu_custom_call.1']
  #allocation3 [shape = 'f32[1]{0:T(128)S(6)}', space=smem, size = 0x200, scoped, tag = 'scoped memory for tpu_custom_call.1']
  %s0 = inlined_call_operand.hbm [shape: f32[8,2,20], index: 0, kind: input, shape index: {}]
  %s1 = inlined_call_operand.hbm [shape: f32[8,2,20], index: 1, kind: input, shape index: {}]
  %s2 = inlined_call_operand.hbm [shape: f32[8,2,20], index: 2, kind: input, shape index: {}]
  %s3 = inlined_call_operand.vmem [shape: f32[2,20], index: 3, kind: input, shape index: {}]
  %s4 = inlined_call_operand.vmem [shape: f32[20,20], index: 4, kind: input, shape index: {}]
  %s5 = inlined_call_operand.vmem [shape: f32[20,20], index: 5, kind: input, shape index: {}]
  %s6 = inlined_call_operand.hbm [shape: f32[20,20], index: 6, kind: input, shape index: {}]
  %s7 = inlined_call_operand.vmem [shape: f32[1,20], index: 7, kind: input, shape index: {}]
  %s8 = inlined_call_operand.vmem [shape: f32[20,1], index: 8, kind: input, shape index: {}]
  %s9 = inlined_call_operand.<no memory space> [shape: f32[1], index: 9, kind: input, shape index: {}]
  %s10 = inlined_call_operand.<no memory space> [shape: f32[1], index: 10, kind: input, shape index: {}]
  %s11 = inlined_call_operand.vmem [shape: f32[2,1], index: 11, kind: output, shape index: {}]
  %s12 = sld [smem:[#allocation0]]
  $region70: #{tpu_custom_call.1} parent=0
    _
  %s14 = ssub.s32 1, %s12
  %s15 = scalar_select 0, %s14, %s12
  %16 = sst [smem:[#allocation2]] %s9
  %17 = sst [smem:[#allocation3]] %s10
  $region1: #{tpu_custom_call.1} parent=0
    #allocation4 [shape = 'u8[8192]{0}', space=vmem, size = 0x2000, scoped, tag = 'input window, operand 0, single buffered']
    #allocation5 [shape = 's32[1]{0}', space=sflag, size = 0x4, scoped, tag = 'scoped memory for tpu_custom_call.1']
    #allocation6 [shape = 'u8[8192]{0}', space=vmem, size = 0x2000, scoped, tag = 'input window, operand 1, single buffered']
    #allocation7 [shape = 's32[1]{0}', space=sflag, size = 0x4, scoped, tag = 'scoped memory for tpu_custom_call.1']
    #allocation8 [shape = 'u8[8192]{0}', space=vmem, size = 0x2000, scoped, tag = 'input window, operand 2, single buffered']
    #allocation9 [shape = 'u8[12288]{0}', space=vmem, size = 0x3000, scoped, tag = 'input window, operand 6, single buffered']
    #allocation10 [shape = 's32[1]{0}', space=sflag, size = 0x4, scoped, tag = 'scoped memory for tpu_custom_call.1']
    %18 = vsyncpa [#allocation5], 0
    %19 = vsyncpa [#allocation7], 0
    %20 = vsyncpa [#allocation10], 0
    // Predicated region
    $region2: #{tpu_custom_call.1} parent=1 // pred_check
      _
    $region3: #{tpu_custom_call.1} parent=1 // pred_check_branch
      %22 = sbr.rel (0) target = $region5
    $region4: #{tpu_custom_call.1} parent=1 // pred_region
      %s24 = ssub.s32 256, 256
      %25 = vsyncadd [#allocation5], %s24
      %s26 = sshll.u32 [#allocation4], 4
      %s27 = int_to_ptr.vmem [resolvable:$true] %s26
      %32 = dma.hbm_to_vmem [thread:$0]  %s0, 256, %s27, [#allocation5], 32, 32, 2
    $region5: #{tpu_custom_call.1} parent=1 // pred_fallthru
      _
    // Predicated region
    $region6: #{tpu_custom_call.1} parent=1 // pred_check
      _
    $region7: #{tpu_custom_call.1} parent=1 // pred_check_branch
      %34 = sbr.rel (0) target = $region9
    $region8: #{tpu_custom_call.1} parent=1 // pred_region
      %s36 = ssub.s32 256, 256
      %37 = vsyncadd [#allocation7], %s36
      %s38 = sshll.u32 [#allocation6], 4
      %s39 = int_to_ptr.vmem [resolvable:$true] %s38
      %44 = dma.hbm_to_vmem [thread:$0]  %s1, 256, %s39, [#allocation7], 32, 32, 2
    $region9: #{tpu_custom_call.1} parent=1 // pred_fallthru
      _
    // Predicated region
    $region10: #{tpu_custom_call.1} parent=1 // pred_check
      _
    $region11: #{tpu_custom_call.1} parent=1 // pred_check_branch
      %46 = sbr.rel (0) target = $region13
    $region12: #{tpu_custom_call.1} parent=1 // pred_region
      %s48 = ssub.s32 256, 256
      %49 = vsyncadd [#allocation7], %s48
      %s50 = sshll.u32 [#allocation8], 4
      %s51 = int_to_ptr.vmem [resolvable:$true] %s50
      %56 = dma.hbm_to_vmem [thread:$0]  %s2, 256, %s51, [#allocation7], 32, 32, 2
    $region13: #{tpu_custom_call.1} parent=1 // pred_fallthru
      _
    // Predicated region
    $region14: #{tpu_custom_call.1} parent=1 // pred_check
      _
    $region15: #{tpu_custom_call.1} parent=1 // pred_check_branch
      %58 = sbr.rel (0) target = $region17
    $region16: #{tpu_custom_call.1} parent=1 // pred_region
      _
    $region17: #{tpu_custom_call.1} parent=1 // pred_fallthru
      _
    // Predicated region
    $region18: #{tpu_custom_call.1} parent=1 // pred_check
      _
    $region19: #{tpu_custom_call.1} parent=1 // pred_check_branch
      %60 = sbr.rel (0) target = $region21
    $region20: #{tpu_custom_call.1} parent=1 // pred_region
      _
    $region21: #{tpu_custom_call.1} parent=1 // pred_fallthru
      _
    // Predicated region
    $region22: #{tpu_custom_call.1} parent=1 // pred_check
      _
    $region23: #{tpu_custom_call.1} parent=1 // pred_check_branch
      %62 = sbr.rel (0) target = $region25
    $region24: #{tpu_custom_call.1} parent=1 // pred_region
      _
    $region25: #{tpu_custom_call.1} parent=1 // pred_fallthru
      _
    // Predicated region
    $region26: #{tpu_custom_call.1} parent=1 // pred_check
      _
    $region27: #{tpu_custom_call.1} parent=1 // pred_check_branch
      %64 = sbr.rel (0) target = $region29
    $region28: #{tpu_custom_call.1} parent=1 // pred_region
      %s66 = ssub.s32 384, 384
      %67 = vsyncadd [#allocation10], %s66
      %s68 = sshll.u32 [#allocation9], 4
      %s69 = int_to_ptr.vmem [resolvable:$true] %s68
      %74 = dma.hbm_to_vmem [thread:$0]  %s6, 384, %s69, [#allocation10], 128, 128, 8
    $region29: #{tpu_custom_call.1} parent=1 // pred_fallthru
      _
    // Predicated region
    $region30: #{tpu_custom_call.1} parent=1 // pred_check
      _
    $region31: #{tpu_custom_call.1} parent=1 // pred_check_branch
      %76 = sbr.rel (0) target = $region33
    $region32: #{tpu_custom_call.1} parent=1 // pred_region
      _
    $region33: #{tpu_custom_call.1} parent=1 // pred_fallthru
      _
    // Predicated region
    $region34: #{tpu_custom_call.1} parent=1 // pred_check
      _
    $region35: #{tpu_custom_call.1} parent=1 // pred_check_branch
      %78 = sbr.rel (0) target = $region37
    $region36: #{tpu_custom_call.1} parent=1 // pred_region
      _
    $region37: #{tpu_custom_call.1} parent=1 // pred_fallthru
      _
    // Predicated region
    $region38: #{tpu_custom_call.1} parent=1 // pred_check
      _
    $region39: #{tpu_custom_call.1} parent=1 // pred_check_branch
      %80 = sbr.rel (0) target = $region41
    $region40: #{tpu_custom_call.1} parent=1 // pred_region
      _
    $region41: #{tpu_custom_call.1} parent=1 // pred_fallthru
      _
    // Predicated region
    $region42: #{tpu_custom_call.1} parent=1 // pred_check
      _
    $region43: #{tpu_custom_call.1} parent=1 // pred_check_branch
      %82 = sbr.rel (0) target = $region45
    $region44: #{tpu_custom_call.1} parent=1 // pred_region
      _
    $region45: #{tpu_custom_call.1} parent=1 // pred_fallthru
      _
    // Predicated region
    $region46: #{tpu_custom_call.1} parent=1 // pred_check
      _
    $region47: #{tpu_custom_call.1} parent=1 // pred_check_branch
      %84 = sbr.rel (0) target = $region49
    $region48: #{tpu_custom_call.1} parent=1 // pred_region
      %85 = dma.done [#allocation5], 256
    $region49: #{tpu_custom_call.1} parent=1 // pred_fallthru
      _
    // Predicated region
    $region50: #{tpu_custom_call.1} parent=1 // pred_check
      _
    $region51: #{tpu_custom_call.1} parent=1 // pred_check_branch
      %87 = sbr.rel (0) target = $region53
    $region52: #{tpu_custom_call.1} parent=1 // pred_region
      %88 = dma.done [#allocation7], 256
    $region53: #{tpu_custom_call.1} parent=1 // pred_fallthru
      _
    // Predicated region
    $region54: #{tpu_custom_call.1} parent=1 // pred_check
      _
    $region55: #{tpu_custom_call.1} parent=1 // pred_check_branch
      %90 = sbr.rel (0) target = $region57
    $region56: #{tpu_custom_call.1} parent=1 // pred_region
      %91 = dma.done [#allocation7], 256
    $region57: #{tpu_custom_call.1} parent=1 // pred_fallthru
      _
    // Predicated region
    $region58: #{tpu_custom_call.1} parent=1 // pred_check
      _
    $region59: #{tpu_custom_call.1} parent=1 // pred_check_branch
      %93 = sbr.rel (0) target = $region61
    $region60: #{tpu_custom_call.1} parent=1 // pred_region
      %94 = dma.done [#allocation10], 384
    $region61: #{tpu_custom_call.1} parent=1 // pred_fallthru
      _
    %v95 = vld [vmem:[%s4] sm:$0xff]
    %v96 = vld [vmem:[%s4 + $0x8] sm:$0xff]
    %v97 = vld [vmem:[%s4 + $0x10] sm:$0xf]
    %v98 = vld [vmem:[%s5] sm:$0xff]
    %v99 = vld [vmem:[%s5 + $0x8] sm:$0xff]
    %v100 = vld [vmem:[%s5 + $0x10] sm:$0xf]
    %v101 = vld [vmem:[#allocation9] sm:$0xff]
    %v102 = vld [vmem:[#allocation9 + $0x8] sm:$0xff]
    %v103 = vld [vmem:[#allocation9 + $0x10] sm:$0xf]
    %v104 = vld [vmem:[%s7] sm:$0x1]
    %v105 = vld [vmem:[%s3] sm:$0x3]
    %v106 = vld [vmem:[#allocation4] sm:$0x3]
    %vm107 = vcmask 162816
    %v109 = vsel %vm107, %v105, 0
    %vm111 = vcmask 1043456
    %v113 = vsel %vm111, %v97, 0
    %115 = vmatprep.subr.mxu0 0.0
    %116 = vmatpush1.msra.mxu0 %v95
    %117 = vmatprep.subr.mxu0 0.0
    %118 = vmatpush1.msra.mxu0 %v96
    %119 = vmatprep.subr.mxu0 0.0
    %120 = vmatpush1.msra.mxu0 %v113
    %121 = vmatprep.subr.mxu0 0.0
    %122 = vmatpush1.msra.mxu0 0.0
    %123 = vmatprep.subr.mxu0 0.0
    %124 = vmatpush1.msra.mxu0 0.0
    %125 = vmatprep.subr.mxu0 0.0
    %126 = vmatpush1.msra.mxu0 0.0
    %127 = vmatprep.subr.mxu0 0.0
    %128 = vmatpush1.msra.mxu0 0.0
    %129 = vmatprep.subr.mxu0 0.0
    %130 = vmatpush1.msra.mxu0 0.0
    %131 = vmatprep.subr.mxu0 0.0
    %132 = vmatpush1.msra.mxu0 0.0
    %133 = vmatprep.subr.mxu0 0.0
    %134 = vmatpush1.msra.mxu0 0.0
    %135 = vmatprep.subr.mxu0 0.0
    %136 = vmatpush1.msra.mxu0 0.0
    %137 = vmatprep.subr.mxu0 0.0
    %138 = vmatpush1.msra.mxu0 0.0
    %139 = vmatprep.subr.mxu0 0.0
    %140 = vmatpush1.msra.mxu0 0.0
    %141 = vmatprep.subr.mxu0 0.0
    %142 = vmatpush1.msra.mxu0 0.0
    %143 = vmatprep.subr.mxu0 0.0
    %144 = vmatpush1.msra.mxu0 0.0
    %145 = vmatprep.subr.mxu0 0.0
    %146 = vmatpush1.msra.mxu0 0.0
    %147 = vmatprep.subr.mxu0 0.0
    %148 = vmatpush1.msra.mxu0 0.0
    %149 = vmatprep.subr.mxu0 0.0
    %150 = vmatpush1.msra.mxu0 0.0
    %151 = vmatprep.subr.mxu0 0.0
    %152 = vmatpush1.msra.mxu0 0.0
    %153 = vmatprep.subr.mxu0 0.0
    %154 = vmatpush1.msra.mxu0 0.0
    %155 = vmatprep.subr.mxu0 0.0
    %156 = vmatpush1.msra.mxu0 0.0
    %157 = vmatprep.subr.mxu0 0.0
    %158 = vmatpush1.msra.mxu0 0.0
    %159 = vmatprep.subr.mxu0 0.0
    %160 = vmatpush1.msra.mxu0 0.0
    %161 = vmatprep.subr.mxu0 0.0
    %162 = vmatpush1.msra.mxu0 0.0
    %163 = vmatprep.subr.mxu0 0.0
    %164 = vmatpush1.msra.mxu0 0.0
    %165 = vmatprep.subr.mxu0 0.0
    %166 = vmatpush1.msra.mxu0 0.0
    %167 = vmatprep.subr.mxu0 0.0
    %168 = vmatpush1.msra.mxu0 0.0
    %169 = vmatprep.subr.mxu0 0.0
    %170 = vmatpush1.msra.mxu0 0.0
    %171 = vmatprep.subr.mxu0 0.0
    %172 = vmatpush1.msra.mxu0 0.0
    %173 = vmatprep.subr.mxu0 0.0
    %174 = vmatpush1.msra.mxu0 0.0
    %175 = vmatprep.subr.mxu0 0.0
    %176 = vmatpush1.msra.mxu0 0.0
    %177 = vmatprep.subr.mxu0 0.0
    %178 = vmatpush1.msra.mxu0 0.0
    %179 = vmatprep.mubr.f32.mxu0 0.0
    %180 = vmatmul.mubr.f32.gmra.mrb[0].mxu0 %v109
    %v181 = vpop.f32.mrb[0].mxu0
    %v182 = vadd.f32 0.0, %v181
    %v183 = vpop.f32.mrb[0].mxu0
    %184 = vdwg.mxu0
    %v185 = vadd.f32 %v106, %v182
    %v186 = vxor.u32 %v185, 2147483648
    %v187 = vmul.f32 %v186, 1.442695
    %v188 = vpow.pop %v187
    %v189 = vadd.f32 %v188, 1.0
    %v190 = vrcp.pop %v189
    %v191 = vmul.f32 1.0, %v190
    %v192 = vld [vmem:[#allocation6] sm:$0x3]
    %v194 = vsel %vm111, %v100, 0
    %196 = vmatprep.subr.mxu0 0.0
    %197 = vmatpush1.msra.mxu0 %v98
    %198 = vmatprep.subr.mxu0 0.0
    %199 = vmatpush1.msra.mxu0 %v99
    %200 = vmatprep.subr.mxu0 0.0
    %201 = vmatpush1.msra.mxu0 %v194
    %202 = vmatprep.subr.mxu0 0.0
    %203 = vmatpush1.msra.mxu0 0.0
    %204 = vmatprep.subr.mxu0 0.0
    %205 = vmatpush1.msra.mxu0 0.0
    %206 = vmatprep.subr.mxu0 0.0
    %207 = vmatpush1.msra.mxu0 0.0
    %208 = vmatprep.subr.mxu0 0.0
    %209 = vmatpush1.msra.mxu0 0.0
    %210 = vmatprep.subr.mxu0 0.0
    %211 = vmatpush1.msra.mxu0 0.0
    %212 = vmatprep.subr.mxu0 0.0
    %213 = vmatpush1.msra.mxu0 0.0
    %214 = vmatprep.subr.mxu0 0.0
    %215 = vmatpush1.msra.mxu0 0.0
    %216 = vmatprep.subr.mxu0 0.0
    %217 = vmatpush1.msra.mxu0 0.0
    %218 = vmatprep.subr.mxu0 0.0
    %219 = vmatpush1.msra.mxu0 0.0
    %220 = vmatprep.subr.mxu0 0.0
    %221 = vmatpush1.msra.mxu0 0.0
    %222 = vmatprep.subr.mxu0 0.0
    %223 = vmatpush1.msra.mxu0 0.0
    %224 = vmatprep.subr.mxu0 0.0
    %225 = vmatpush1.msra.mxu0 0.0
    %226 = vmatprep.subr.mxu0 0.0
    %227 = vmatpush1.msra.mxu0 0.0
    %228 = vmatprep.subr.mxu0 0.0
    %229 = vmatpush1.msra.mxu0 0.0
    %230 = vmatprep.subr.mxu0 0.0
    %231 = vmatpush1.msra.mxu0 0.0
    %232 = vmatprep.subr.mxu0 0.0
    %233 = vmatpush1.msra.mxu0 0.0
    %234 = vmatprep.subr.mxu0 0.0
    %235 = vmatpush1.msra.mxu0 0.0
    %236 = vmatprep.subr.mxu0 0.0
    %237 = vmatpush1.msra.mxu0 0.0
    %238 = vmatprep.subr.mxu0 0.0
    %239 = vmatpush1.msra.mxu0 0.0
    %240 = vmatprep.subr.mxu0 0.0
    %241 = vmatpush1.msra.mxu0 0.0
    %242 = vmatprep.subr.mxu0 0.0
    %243 = vmatpush1.msra.mxu0 0.0
    %244 = vmatprep.subr.mxu0 0.0
    %245 = vmatpush1.msra.mxu0 0.0
    %246 = vmatprep.subr.mxu0 0.0
    %247 = vmatpush1.msra.mxu0 0.0
    %248 = vmatprep.subr.mxu0 0.0
    %249 = vmatpush1.msra.mxu0 0.0
    %250 = vmatprep.subr.mxu0 0.0
    %251 = vmatpush1.msra.mxu0 0.0
    %252 = vmatprep.subr.mxu0 0.0
    %253 = vmatpush1.msra.mxu0 0.0
    %254 = vmatprep.subr.mxu0 0.0
    %255 = vmatpush1.msra.mxu0 0.0
    %256 = vmatprep.subr.mxu0 0.0
    %257 = vmatpush1.msra.mxu0 0.0
    %258 = vmatprep.subr.mxu0 0.0
    %259 = vmatpush1.msra.mxu0 0.0
    %260 = vmatprep.mubr.f32.mxu0 0.0
    %261 = vmatmul.mubr.f32.gmra.mrb[0].mxu0 %v109
    %v262 = vpop.f32.mrb[0].mxu0
    %v263 = vadd.f32 0.0, %v262
    %v264 = vpop.f32.mrb[0].mxu0
    %265 = vdwg.mxu0
    %v266 = vadd.f32 %v192, %v263
    %v267 = vxor.u32 %v266, 2147483648
    %v268 = vmul.f32 %v267, 1.442695
    %v269 = vpow.pop %v268
    %v270 = vadd.f32 %v269, 1.0
    %v271 = vrcp.pop %v270
    %v272 = vmul.f32 1.0, %v271
    %v274 = vlaneseq
    %v275 = vshrl.u32 %v274, 7
    %v276 = vsub.s32 0, %v275
    %v277 = vrot.slane %v104, %v276
    %v280 = vsel %vm111, %v103, 0
    %282 = vmatprep.subr.mxu0 0.0
    %283 = vmatpush1.msra.mxu0 %v101
    %284 = vmatprep.subr.mxu0 0.0
    %285 = vmatpush1.msra.mxu0 %v102
    %286 = vmatprep.subr.mxu0 0.0
    %287 = vmatpush1.msra.mxu0 %v280
    %288 = vmatprep.subr.mxu0 0.0
    %289 = vmatpush1.msra.mxu0 0.0
    %290 = vmatprep.subr.mxu0 0.0
    %291 = vmatpush1.msra.mxu0 0.0
    %292 = vmatprep.subr.mxu0 0.0
    %293 = vmatpush1.msra.mxu0 0.0
    %294 = vmatprep.subr.mxu0 0.0
    %295 = vmatpush1.msra.mxu0 0.0
    %296 = vmatprep.subr.mxu0 0.0
    %297 = vmatpush1.msra.mxu0 0.0
    %298 = vmatprep.subr.mxu0 0.0
    %299 = vmatpush1.msra.mxu0 0.0
    %300 = vmatprep.subr.mxu0 0.0
    %301 = vmatpush1.msra.mxu0 0.0
    %302 = vmatprep.subr.mxu0 0.0
    %303 = vmatpush1.msra.mxu0 0.0
    %304 = vmatprep.subr.mxu0 0.0
    %305 = vmatpush1.msra.mxu0 0.0
    %306 = vmatprep.subr.mxu0 0.0
    %307 = vmatpush1.msra.mxu0 0.0
    %308 = vmatprep.subr.mxu0 0.0
    %309 = vmatpush1.msra.mxu0 0.0
    %310 = vmatprep.subr.mxu0 0.0
    %311 = vmatpush1.msra.mxu0 0.0
    %312 = vmatprep.subr.mxu0 0.0
    %313 = vmatpush1.msra.mxu0 0.0
    %314 = vmatprep.subr.mxu0 0.0
    %315 = vmatpush1.msra.mxu0 0.0
    %316 = vmatprep.subr.mxu0 0.0
    %317 = vmatpush1.msra.mxu0 0.0
    %318 = vmatprep.subr.mxu0 0.0
    %319 = vmatpush1.msra.mxu0 0.0
    %320 = vmatprep.subr.mxu0 0.0
    %321 = vmatpush1.msra.mxu0 0.0
    %322 = vmatprep.subr.mxu0 0.0
    %323 = vmatpush1.msra.mxu0 0.0
    %324 = vmatprep.subr.mxu0 0.0
    %325 = vmatpush1.msra.mxu0 0.0
    %326 = vmatprep.subr.mxu0 0.0
    %327 = vmatpush1.msra.mxu0 0.0
    %328 = vmatprep.subr.mxu0 0.0
    %329 = vmatpush1.msra.mxu0 0.0
    %330 = vmatprep.subr.mxu0 0.0
    %331 = vmatpush1.msra.mxu0 0.0
    %332 = vmatprep.subr.mxu0 0.0
    %333 = vmatpush1.msra.mxu0 0.0
    %334 = vmatprep.subr.mxu0 0.0
    %335 = vmatpush1.msra.mxu0 0.0
    %336 = vmatprep.subr.mxu0 0.0
    %337 = vmatpush1.msra.mxu0 0.0
    %338 = vmatprep.subr.mxu0 0.0
    %339 = vmatpush1.msra.mxu0 0.0
    %340 = vmatprep.subr.mxu0 0.0
    %341 = vmatpush1.msra.mxu0 0.0
    %342 = vmatprep.subr.mxu0 0.0
    %343 = vmatpush1.msra.mxu0 0.0
    %344 = vmatprep.subr.mxu0 0.0
    %345 = vmatpush1.msra.mxu0 0.0
    %346 = vmatprep.mubr.f32.mxu0 0.0
    %347 = vmatmul.mubr.f32.gmra.mrb[0].mxu0 %v109
    %v348 = vpop.f32.mrb[0].mxu0
    %v349 = vadd.f32 %v277, %v348
    %v350 = vpop.f32.mrb[0].mxu0
    %351 = vdwg.mxu0
    %v352 = vld [vmem:[#allocation8] sm:$0x3]
    %v353 = vmul.f32 %v191, %v349
    %v354 = vadd.f32 %v352, %v353
    %v355 = vtanh.pop %v354
    %v356 = vsub.f32 %v105, %v355
    %v357 = vmul.f32 %v272, %v356
    %v358 = vadd.f32 %v355, %v357
    %s359 = scalar_lea.vmem [#allocation4], 2
    %v360 = vld [vmem:[%s359] sm:$0x3]
    %v362 = vsel %vm107, %v358, 0
    %364 = vmatprep.subr.mxu0 0.0
    %365 = vmatpush1.msra.mxu0 %v95
    %366 = vmatprep.subr.mxu0 0.0
    %367 = vmatpush1.msra.mxu0 %v96
    %368 = vmatprep.subr.mxu0 0.0
    %369 = vmatpush1.msra.mxu0 %v113
    %370 = vmatprep.subr.mxu0 0.0
    %371 = vmatpush1.msra.mxu0 0.0
    %372 = vmatprep.subr.mxu0 0.0
    %373 = vmatpush1.msra.mxu0 0.0
    %374 = vmatprep.subr.mxu0 0.0
    %375 = vmatpush1.msra.mxu0 0.0
    %376 = vmatprep.subr.mxu0 0.0
    %377 = vmatpush1.msra.mxu0 0.0
    %378 = vmatprep.subr.mxu0 0.0
    %379 = vmatpush1.msra.mxu0 0.0
    %380 = vmatprep.subr.mxu0 0.0
    %381 = vmatpush1.msra.mxu0 0.0
    %382 = vmatprep.subr.mxu0 0.0
    %383 = vmatpush1.msra.mxu0 0.0
    %384 = vmatprep.subr.mxu0 0.0
    %385 = vmatpush1.msra.mxu0 0.0
    %386 = vmatprep.subr.mxu0 0.0
    %387 = vmatpush1.msra.mxu0 0.0
    %388 = vmatprep.subr.mxu0 0.0
    %389 = vmatpush1.msra.mxu0 0.0
    %390 = vmatprep.subr.mxu0 0.0
    %391 = vmatpush1.msra.mxu0 0.0
    %392 = vmatprep.subr.mxu0 0.0
    %393 = vmatpush1.msra.mxu0 0.0
    %394 = vmatprep.subr.mxu0 0.0
    %395 = vmatpush1.msra.mxu0 0.0
    %396 = vmatprep.subr.mxu0 0.0
    %397 = vmatpush1.msra.mxu0 0.0
    %398 = vmatprep.subr.mxu0 0.0
    %399 = vmatpush1.msra.mxu0 0.0
    %400 = vmatprep.subr.mxu0 0.0
    %401 = vmatpush1.msra.mxu0 0.0
    %402 = vmatprep.subr.mxu0 0.0
    %403 = vmatpush1.msra.mxu0 0.0
    %404 = vmatprep.subr.mxu0 0.0
    %405 = vmatpush1.msra.mxu0 0.0
    %406 = vmatprep.subr.mxu0 0.0
    %407 = vmatpush1.msra.mxu0 0.0
    %408 = vmatprep.subr.mxu0 0.0
    %409 = vmatpush1.msra.mxu0 0.0
    %410 = vmatprep.subr.mxu0 0.0
    %411 = vmatpush1.msra.mxu0 0.0
    %412 = vmatprep.subr.mxu0 0.0
    %413 = vmatpush1.msra.mxu0 0.0
    %414 = vmatprep.subr.mxu0 0.0
    %415 = vmatpush1.msra.mxu0 0.0
    %416 = vmatprep.subr.mxu0 0.0
    %417 = vmatpush1.msra.mxu0 0.0
    %418 = vmatprep.subr.mxu0 0.0
    %419 = vmatpush1.msra.mxu0 0.0
    %420 = vmatprep.subr.mxu0 0.0
    %421 = vmatpush1.msra.mxu0 0.0
    %422 = vmatprep.subr.mxu0 0.0
    %423 = vmatpush1.msra.mxu0 0.0
    %424 = vmatprep.subr.mxu0 0.0
    %425 = vmatpush1.msra.mxu0 0.0
    %426 = vmatprep.subr.mxu0 0.0
    %427 = vmatpush1.msra.mxu0 0.0
    %428 = vmatprep.mubr.f32.mxu0 0.0
    %429 = vmatmul.mubr.f32.gmra.mrb[0].mxu0 %v362
    %v430 = vpop.f32.mrb[0].mxu0
    %v431 = vadd.f32 0.0, %v430
    %v432 = vpop.f32.mrb[0].mxu0
    %433 = vdwg.mxu0
    %v434 = vadd.f32 %v360, %v431
    %v435 = vxor.u32 %v434, 2147483648
    %v436 = vmul.f32 %v435, 1.442695
    %v437 = vpow.pop %v436
    %v438 = vadd.f32 %v437, 1.0
    %v439 = vrcp.pop %v438
    %v440 = vmul.f32 1.0, %v439
    %s441 = scalar_lea.vmem [#allocation6], 2
    %v442 = vld [vmem:[%s441] sm:$0x3]
    %443 = vmatprep.subr.mxu0 0.0
    %444 = vmatpush1.msra.mxu0 %v98
    %445 = vmatprep.subr.mxu0 0.0
    %446 = vmatpush1.msra.mxu0 %v99
    %447 = vmatprep.subr.mxu0 0.0
    %448 = vmatpush1.msra.mxu0 %v194
    %449 = vmatprep.subr.mxu0 0.0
    %450 = vmatpush1.msra.mxu0 0.0
    %451 = vmatprep.subr.mxu0 0.0
    %452 = vmatpush1.msra.mxu0 0.0
    %453 = vmatprep.subr.mxu0 0.0
    %454 = vmatpush1.msra.mxu0 0.0
    %455 = vmatprep.subr.mxu0 0.0
    %456 = vmatpush1.msra.mxu0 0.0
    %457 = vmatprep.subr.mxu0 0.0
    %458 = vmatpush1.msra.mxu0 0.0
    %459 = vmatprep.subr.mxu0 0.0
    %460 = vmatpush1.msra.mxu0 0.0
    %461 = vmatprep.subr.mxu0 0.0
    %462 = vmatpush1.msra.mxu0 0.0
    %463 = vmatprep.subr.mxu0 0.0
    %464 = vmatpush1.msra.mxu0 0.0
    %465 = vmatprep.subr.mxu0 0.0
    %466 = vmatpush1.msra.mxu0 0.0
    %467 = vmatprep.subr.mxu0 0.0
    %468 = vmatpush1.msra.mxu0 0.0
    %469 = vmatprep.subr.mxu0 0.0
    %470 = vmatpush1.msra.mxu0 0.0
    %471 = vmatprep.subr.mxu0 0.0
    %472 = vmatpush1.msra.mxu0 0.0
    %473 = vmatprep.subr.mxu0 0.0
    %474 = vmatpush1.msra.mxu0 0.0
    %475 = vmatprep.subr.mxu0 0.0
    %476 = vmatpush1.msra.mxu0 0.0
    %477 = vmatprep.subr.mxu0 0.0
    %478 = vmatpush1.msra.mxu0 0.0
    %479 = vmatprep.subr.mxu0 0.0
    %480 = vmatpush1.msra.mxu0 0.0
    %481 = vmatprep.subr.mxu0 0.0
    %482 = vmatpush1.msra.mxu0 0.0
    %483 = vmatprep.subr.mxu0 0.0
    %484 = vmatpush1.msra.mxu0 0.0
    %485 = vmatprep.subr.mxu0 0.0
    %486 = vmatpush1.msra.mxu0 0.0
    %487 = vmatprep.subr.mxu0 0.0
    %488 = vmatpush1.msra.mxu0 0.0
    %489 = vmatprep.subr.mxu0 0.0
    %490 = vmatpush1.msra.mxu0 0.0
    %491 = vmatprep.subr.mxu0 0.0
    %492 = vmatpush1.msra.mxu0 0.0
    %493 = vmatprep.subr.mxu0 0.0
    %494 = vmatpush1.msra.mxu0 0.0
    %495 = vmatprep.subr.mxu0 0.0
    %496 = vmatpush1.msra.mxu0 0.0
    %497 = vmatprep.subr.mxu0 0.0
    %498 = vmatpush1.msra.mxu0 0.0
    %499 = vmatprep.subr.mxu0 0.0
    %500 = vmatpush1.msra.mxu0 0.0
    %501 = vmatprep.subr.mxu0 0.0
    %502 = vmatpush1.msra.mxu0 0.0
    %503 = vmatprep.subr.mxu0 0.0
    %504 = vmatpush1.msra.mxu0 0.0
    %505 = vmatprep.subr.mxu0 0.0
    %506 = vmatpush1.msra.mxu0 0.0
    %507 = vmatprep.mubr.f32.mxu0 0.0
    %508 = vmatmul.mubr.f32.gmra.mrb[0].mxu0 %v362
    %v509 = vpop.f32.mrb[0].mxu0
    %v510 = vadd.f32 0.0, %v509
    %v511 = vpop.f32.mrb[0].mxu0
    %512 = vdwg.mxu0
    %v513 = vadd.f32 %v442, %v510
    %v514 = vxor.u32 %v513, 2147483648
    %v515 = vmul.f32 %v514, 1.442695
    %v516 = vpow.pop %v515
    %v517 = vadd.f32 %v516, 1.0
    %v518 = vrcp.pop %v517
    %v519 = vmul.f32 1.0, %v518
    %520 = vmatprep.subr.mxu0 0.0
    %521 = vmatpush1.msra.mxu0 %v101
    %522 = vmatprep.subr.mxu0 0.0
    %523 = vmatpush1.msra.mxu0 %v102
    %524 = vmatprep.subr.mxu0 0.0
    %525 = vmatpush1.msra.mxu0 %v280
    %526 = vmatprep.subr.mxu0 0.0
    %527 = vmatpush1.msra.mxu0 0.0
    %528 = vmatprep.subr.mxu0 0.0
    %529 = vmatpush1.msra.mxu0 0.0
    %530 = vmatprep.subr.mxu0 0.0
    %531 = vmatpush1.msra.mxu0 0.0
    %532 = vmatprep.subr.mxu0 0.0
    %533 = vmatpush1.msra.mxu0 0.0
    %534 = vmatprep.subr.mxu0 0.0
    %535 = vmatpush1.msra.mxu0 0.0
    %536 = vmatprep.subr.mxu0 0.0
    %537 = vmatpush1.msra.mxu0 0.0
    %538 = vmatprep.subr.mxu0 0.0
    %539 = vmatpush1.msra.mxu0 0.0
    %540 = vmatprep.subr.mxu0 0.0
    %541 = vmatpush1.msra.mxu0 0.0
    %542 = vmatprep.subr.mxu0 0.0
    %543 = vmatpush1.msra.mxu0 0.0
    %544 = vmatprep.subr.mxu0 0.0
    %545 = vmatpush1.msra.mxu0 0.0
    %546 = vmatprep.subr.mxu0 0.0
    %547 = vmatpush1.msra.mxu0 0.0
    %548 = vmatprep.subr.mxu0 0.0
    %549 = vmatpush1.msra.mxu0 0.0
    %550 = vmatprep.subr.mxu0 0.0
    %551 = vmatpush1.msra.mxu0 0.0
    %552 = vmatprep.subr.mxu0 0.0
    %553 = vmatpush1.msra.mxu0 0.0
    %554 = vmatprep.subr.mxu0 0.0
    %555 = vmatpush1.msra.mxu0 0.0
    %556 = vmatprep.subr.mxu0 0.0
    %557 = vmatpush1.msra.mxu0 0.0
    %558 = vmatprep.subr.mxu0 0.0
    %559 = vmatpush1.msra.mxu0 0.0
    %560 = vmatprep.subr.mxu0 0.0
    %561 = vmatpush1.msra.mxu0 0.0
    %562 = vmatprep.subr.mxu0 0.0
    %563 = vmatpush1.msra.mxu0 0.0
    %564 = vmatprep.subr.mxu0 0.0
    %565 = vmatpush1.msra.mxu0 0.0
    %566 = vmatprep.subr.mxu0 0.0
    %567 = vmatpush1.msra.mxu0 0.0
    %568 = vmatprep.subr.mxu0 0.0
    %569 = vmatpush1.msra.mxu0 0.0
    %570 = vmatprep.subr.mxu0 0.0
    %571 = vmatpush1.msra.mxu0 0.0
    %572 = vmatprep.subr.mxu0 0.0
    %573 = vmatpush1.msra.mxu0 0.0
    %574 = vmatprep.subr.mxu0 0.0
    %575 = vmatpush1.msra.mxu0 0.0
    %576 = vmatprep.subr.mxu0 0.0
    %577 = vmatpush1.msra.mxu0 0.0
    %578 = vmatprep.subr.mxu0 0.0
    %579 = vmatpush1.msra.mxu0 0.0
    %580 = vmatprep.subr.mxu0 0.0
    %581 = vmatpush1.msra.mxu0 0.0
    %582 = vmatprep.subr.mxu0 0.0
    %583 = vmatpush1.msra.mxu0 0.0
    %584 = vmatprep.mubr.f32.mxu0 0.0
    %585 = vmatmul.mubr.f32.gmra.mrb[0].mxu0 %v362
    %v586 = vpop.f32.mrb[0].mxu0
    %v587 = vadd.f32 %v277, %v586
    %v588 = vpop.f32.mrb[0].mxu0
    %589 = vdwg.mxu0
    %s590 = scalar_lea.vmem [#allocation8], 2
    %v591 = vld [vmem:[%s590] sm:$0x3]
    %v592 = vmul.f32 %v440, %v587
    %v593 = vadd.f32 %v591, %v592
    %v594 = vtanh.pop %v593
    %v595 = vsub.f32 %v358, %v594
    %v596 = vmul.f32 %v519, %v595
    %v597 = vadd.f32 %v594, %v596
    %s598 = scalar_lea.vmem [#allocation4], 4
    %v599 = vld [vmem:[%s598] sm:$0x3]
    %v601 = vsel %vm107, %v597, 0
    %603 = vmatprep.subr.mxu0 0.0
    %604 = vmatpush1.msra.mxu0 %v95
    %605 = vmatprep.subr.mxu0 0.0
    %606 = vmatpush1.msra.mxu0 %v96
    %607 = vmatprep.subr.mxu0 0.0
    %608 = vmatpush1.msra.mxu0 %v113
    %609 = vmatprep.subr.mxu0 0.0
    %610 = vmatpush1.msra.mxu0 0.0
    %611 = vmatprep.subr.mxu0 0.0
    %612 = vmatpush1.msra.mxu0 0.0
    %613 = vmatprep.subr.mxu0 0.0
    %614 = vmatpush1.msra.mxu0 0.0
    %615 = vmatprep.subr.mxu0 0.0
    %616 = vmatpush1.msra.mxu0 0.0
    %617 = vmatprep.subr.mxu0 0.0
    %618 = vmatpush1.msra.mxu0 0.0
    %619 = vmatprep.subr.mxu0 0.0
    %620 = vmatpush1.msra.mxu0 0.0
    %621 = vmatprep.subr.mxu0 0.0
    %622 = vmatpush1.msra.mxu0 0.0
    %623 = vmatprep.subr.mxu0 0.0
    %624 = vmatpush1.msra.mxu0 0.0
    %625 = vmatprep.subr.mxu0 0.0
    %626 = vmatpush1.msra.mxu0 0.0
    %627 = vmatprep.subr.mxu0 0.0
    %628 = vmatpush1.msra.mxu0 0.0
    %629 = vmatprep.subr.mxu0 0.0
    %630 = vmatpush1.msra.mxu0 0.0
    %631 = vmatprep.subr.mxu0 0.0
    %632 = vmatpush1.msra.mxu0 0.0
    %633 = vmatprep.subr.mxu0 0.0
    %634 = vmatpush1.msra.mxu0 0.0
    %635 = vmatprep.subr.mxu0 0.0
    %636 = vmatpush1.msra.mxu0 0.0
    %637 = vmatprep.subr.mxu0 0.0
    %638 = vmatpush1.msra.mxu0 0.0
    %639 = vmatprep.subr.mxu0 0.0
    %640 = vmatpush1.msra.mxu0 0.0
    %641 = vmatprep.subr.mxu0 0.0
    %642 = vmatpush1.msra.mxu0 0.0
    %643 = vmatprep.subr.mxu0 0.0
    %644 = vmatpush1.msra.mxu0 0.0
    %645 = vmatprep.subr.mxu0 0.0
    %646 = vmatpush1.msra.mxu0 0.0
    %647 = vmatprep.subr.mxu0 0.0
    %648 = vmatpush1.msra.mxu0 0.0
    %649 = vmatprep.subr.mxu0 0.0
    %650 = vmatpush1.msra.mxu0 0.0
    %651 = vmatprep.subr.mxu0 0.0
    %652 = vmatpush1.msra.mxu0 0.0
    %653 = vmatprep.subr.mxu0 0.0
    %654 = vmatpush1.msra.mxu0 0.0
    %655 = vmatprep.subr.mxu0 0.0
    %656 = vmatpush1.msra.mxu0 0.0
    %657 = vmatprep.subr.mxu0 0.0
    %658 = vmatpush1.msra.mxu0 0.0
    %659 = vmatprep.subr.mxu0 0.0
    %660 = vmatpush1.msra.mxu0 0.0
    %661 = vmatprep.subr.mxu0 0.0
    %662 = vmatpush1.msra.mxu0 0.0
    %663 = vmatprep.subr.mxu0 0.0
    %664 = vmatpush1.msra.mxu0 0.0
    %665 = vmatprep.subr.mxu0 0.0
    %666 = vmatpush1.msra.mxu0 0.0
    %667 = vmatprep.mubr.f32.mxu0 0.0
    %668 = vmatmul.mubr.f32.gmra.mrb[0].mxu0 %v601
    %v669 = vpop.f32.mrb[0].mxu0
    %v670 = vadd.f32 0.0, %v669
    %v671 = vpop.f32.mrb[0].mxu0
    %672 = vdwg.mxu0
    %v673 = vadd.f32 %v599, %v670
    %v674 = vxor.u32 %v673, 2147483648
    %v675 = vmul.f32 %v674, 1.442695
    %v676 = vpow.pop %v675
    %v677 = vadd.f32 %v676, 1.0
    %v678 = vrcp.pop %v677
    %v679 = vmul.f32 1.0, %v678
    %s680 = scalar_lea.vmem [#allocation6], 4
    %v681 = vld [vmem:[%s680] sm:$0x3]
    %682 = vmatprep.subr.mxu0 0.0
    %683 = vmatpush1.msra.mxu0 %v98
    %684 = vmatprep.subr.mxu0 0.0
    %685 = vmatpush1.msra.mxu0 %v99
    %686 = vmatprep.subr.mxu0 0.0
    %687 = vmatpush1.msra.mxu0 %v194
    %688 = vmatprep.subr.mxu0 0.0
    %689 = vmatpush1.msra.mxu0 0.0
    %690 = vmatprep.subr.mxu0 0.0
    %691 = vmatpush1.msra.mxu0 0.0
    %692 = vmatprep.subr.mxu0 0.0
    %693 = vmatpush1.msra.mxu0 0.0
    %694 = vmatprep.subr.mxu0 0.0
    %695 = vmatpush1.msra.mxu0 0.0
    %696 = vmatprep.subr.mxu0 0.0
    %697 = vmatpush1.msra.mxu0 0.0
    %698 = vmatprep.subr.mxu0 0.0
    %699 = vmatpush1.msra.mxu0 0.0
    %700 = vmatprep.subr.mxu0 0.0
    %701 = vmatpush1.msra.mxu0 0.0
    %702 = vmatprep.subr.mxu0 0.0
    %703 = vmatpush1.msra.mxu0 0.0
    %704 = vmatprep.subr.mxu0 0.0
    %705 = vmatpush1.msra.mxu0 0.0
    %706 = vmatprep.subr.mxu0 0.0
    %707 = vmatpush1.msra.mxu0 0.0
    %708 = vmatprep.subr.mxu0 0.0
    %709 = vmatpush1.msra.mxu0 0.0
    %710 = vmatprep.subr.mxu0 0.0
    %711 = vmatpush1.msra.mxu0 0.0
    %712 = vmatprep.subr.mxu0 0.0
    %713 = vmatpush1.msra.mxu0 0.0
    %714 = vmatprep.subr.mxu0 0.0
    %715 = vmatpush1.msra.mxu0 0.0
    %716 = vmatprep.subr.mxu0 0.0
    %717 = vmatpush1.msra.mxu0 0.0
    %718 = vmatprep.subr.mxu0 0.0
    %719 = vmatpush1.msra.mxu0 0.0
    %720 = vmatprep.subr.mxu0 0.0
    %721 = vmatpush1.msra.mxu0 0.0
    %722 = vmatprep.subr.mxu0 0.0
    %723 = vmatpush1.msra.mxu0 0.0
    %724 = vmatprep.subr.mxu0 0.0
    %725 = vmatpush1.msra.mxu0 0.0
    %726 = vmatprep.subr.mxu0 0.0
    %727 = vmatpush1.msra.mxu0 0.0
    %728 = vmatprep.subr.mxu0 0.0
    %729 = vmatpush1.msra.mxu0 0.0
    %730 = vmatprep.subr.mxu0 0.0
    %731 = vmatpush1.msra.mxu0 0.0
    %732 = vmatprep.subr.mxu0 0.0
    %733 = vmatpush1.msra.mxu0 0.0
    %734 = vmatprep.subr.mxu0 0.0
    %735 = vmatpush1.msra.mxu0 0.0
    %736 = vmatprep.subr.mxu0 0.0
    %737 = vmatpush1.msra.mxu0 0.0
    %738 = vmatprep.subr.mxu0 0.0
    %739 = vmatpush1.msra.mxu0 0.0
    %740 = vmatprep.subr.mxu0 0.0
    %741 = vmatpush1.msra.mxu0 0.0
    %742 = vmatprep.subr.mxu0 0.0
    %743 = vmatpush1.msra.mxu0 0.0
    %744 = vmatprep.subr.mxu0 0.0
    %745 = vmatpush1.msra.mxu0 0.0
    %746 = vmatprep.mubr.f32.mxu0 0.0
    %747 = vmatmul.mubr.f32.gmra.mrb[0].mxu0 %v601
    %v748 = vpop.f32.mrb[0].mxu0
    %v749 = vadd.f32 0.0, %v748
    %v750 = vpop.f32.mrb[0].mxu0
    %751 = vdwg.mxu0
    %v752 = vadd.f32 %v681, %v749
    %v753 = vxor.u32 %v752, 2147483648
    %v754 = vmul.f32 %v753, 1.442695
    %v755 = vpow.pop %v754
    %v756 = vadd.f32 %v755, 1.0
    %v757 = vrcp.pop %v756
    %v758 = vmul.f32 1.0, %v757
    %759 = vmatprep.subr.mxu0 0.0
    %760 = vmatpush1.msra.mxu0 %v101
    %761 = vmatprep.subr.mxu0 0.0
    %762 = vmatpush1.msra.mxu0 %v102
    %763 = vmatprep.subr.mxu0 0.0
    %764 = vmatpush1.msra.mxu0 %v280
    %765 = vmatprep.subr.mxu0 0.0
    %766 = vmatpush1.msra.mxu0 0.0
    %767 = vmatprep.subr.mxu0 0.0
    %768 = vmatpush1.msra.mxu0 0.0
    %769 = vmatprep.subr.mxu0 0.0
    %770 = vmatpush1.msra.mxu0 0.0
    %771 = vmatprep.subr.mxu0 0.0
    %772 = vmatpush1.msra.mxu0 0.0
    %773 = vmatprep.subr.mxu0 0.0
    %774 = vmatpush1.msra.mxu0 0.0
    %775 = vmatprep.subr.mxu0 0.0
    %776 = vmatpush1.msra.mxu0 0.0
    %777 = vmatprep.subr.mxu0 0.0
    %778 = vmatpush1.msra.mxu0 0.0
    %779 = vmatprep.subr.mxu0 0.0
    %780 = vmatpush1.msra.mxu0 0.0
    %781 = vmatprep.subr.mxu0 0.0
    %782 = vmatpush1.msra.mxu0 0.0
    %783 = vmatprep.subr.mxu0 0.0
    %784 = vmatpush1.msra.mxu0 0.0
    %785 = vmatprep.subr.mxu0 0.0
    %786 = vmatpush1.msra.mxu0 0.0
    %787 = vmatprep.subr.mxu0 0.0
    %788 = vmatpush1.msra.mxu0 0.0
    %789 = vmatprep.subr.mxu0 0.0
    %790 = vmatpush1.msra.mxu0 0.0
    %791 = vmatprep.subr.mxu0 0.0
    %792 = vmatpush1.msra.mxu0 0.0
    %793 = vmatprep.subr.mxu0 0.0
    %794 = vmatpush1.msra.mxu0 0.0
    %795 = vmatprep.subr.mxu0 0.0
    %796 = vmatpush1.msra.mxu0 0.0
    %797 = vmatprep.subr.mxu0 0.0
    %798 = vmatpush1.msra.mxu0 0.0
    %799 = vmatprep.subr.mxu0 0.0
    %800 = vmatpush1.msra.mxu0 0.0
    %801 = vmatprep.subr.mxu0 0.0
    %802 = vmatpush1.msra.mxu0 0.0
    %803 = vmatprep.subr.mxu0 0.0
    %804 = vmatpush1.msra.mxu0 0.0
    %805 = vmatprep.subr.mxu0 0.0
    %806 = vmatpush1.msra.mxu0 0.0
    %807 = vmatprep.subr.mxu0 0.0
    %808 = vmatpush1.msra.mxu0 0.0
    %809 = vmatprep.subr.mxu0 0.0
    %810 = vmatpush1.msra.mxu0 0.0
    %811 = vmatprep.subr.mxu0 0.0
    %812 = vmatpush1.msra.mxu0 0.0
    %813 = vmatprep.subr.mxu0 0.0
    %814 = vmatpush1.msra.mxu0 0.0
    %815 = vmatprep.subr.mxu0 0.0
    %816 = vmatpush1.msra.mxu0 0.0
    %817 = vmatprep.subr.mxu0 0.0
    %818 = vmatpush1.msra.mxu0 0.0
    %819 = vmatprep.subr.mxu0 0.0
    %820 = vmatpush1.msra.mxu0 0.0
    %821 = vmatprep.subr.mxu0 0.0
    %822 = vmatpush1.msra.mxu0 0.0
    %823 = vmatprep.mubr.f32.mxu0 0.0
    %824 = vmatmul.mubr.f32.gmra.mrb[0].mxu0 %v601
    %v825 = vpop.f32.mrb[0].mxu0
    %v826 = vadd.f32 %v277, %v825
    %v827 = vpop.f32.mrb[0].mxu0
    %828 = vdwg.mxu0
    %s829 = scalar_lea.vmem [#allocation8], 4
    %v830 = vld [vmem:[%s829] sm:$0x3]
    %v831 = vmul.f32 %v679, %v826
    %v832 = vadd.f32 %v830, %v831
    %v833 = vtanh.pop %v832
    %v834 = vsub.f32 %v597, %v833
    %v835 = vmul.f32 %v758, %v834
    %v836 = vadd.f32 %v833, %v835
    %s837 = scalar_lea.vmem [#allocation4], 6
    %v838 = vld [vmem:[%s837] sm:$0x3]
    %v840 = vsel %vm107, %v836, 0
    %842 = vmatprep.subr.mxu0 0.0
    %843 = vmatpush1.msra.mxu0 %v95
    %844 = vmatprep.subr.mxu0 0.0
    %845 = vmatpush1.msra.mxu0 %v96
    %846 = vmatprep.subr.mxu0 0.0
    %847 = vmatpush1.msra.mxu0 %v113
    %848 = vmatprep.subr.mxu0 0.0
    %849 = vmatpush1.msra.mxu0 0.0
    %850 = vmatprep.subr.mxu0 0.0
    %851 = vmatpush1.msra.mxu0 0.0
    %852 = vmatprep.subr.mxu0 0.0
    %853 = vmatpush1.msra.mxu0 0.0
    %854 = vmatprep.subr.mxu0 0.0
    %855 = vmatpush1.msra.mxu0 0.0
    %856 = vmatprep.subr.mxu0 0.0
    %857 = vmatpush1.msra.mxu0 0.0
    %858 = vmatprep.subr.mxu0 0.0
    %859 = vmatpush1.msra.mxu0 0.0
    %860 = vmatprep.subr.mxu0 0.0
    %861 = vmatpush1.msra.mxu0 0.0
    %862 = vmatprep.subr.mxu0 0.0
    %863 = vmatpush1.msra.mxu0 0.0
    %864 = vmatprep.subr.mxu0 0.0
    %865 = vmatpush1.msra.mxu0 0.0
    %866 = vmatprep.subr.mxu0 0.0
    %867 = vmatpush1.msra.mxu0 0.0
    %868 = vmatprep.subr.mxu0 0.0
    %869 = vmatpush1.msra.mxu0 0.0
    %870 = vmatprep.subr.mxu0 0.0
    %871 = vmatpush1.msra.mxu0 0.0
    %872 = vmatprep.subr.mxu0 0.0
    %873 = vmatpush1.msra.mxu0 0.0
    %874 = vmatprep.subr.mxu0 0.0
    %875 = vmatpush1.msra.mxu0 0.0
    %876 = vmatprep.subr.mxu0 0.0
    %877 = vmatpush1.msra.mxu0 0.0
    %878 = vmatprep.subr.mxu0 0.0
    %879 = vmatpush1.msra.mxu0 0.0
    %880 = vmatprep.subr.mxu0 0.0
    %881 = vmatpush1.msra.mxu0 0.0
    %882 = vmatprep.subr.mxu0 0.0
    %883 = vmatpush1.msra.mxu0 0.0
    %884 = vmatprep.subr.mxu0 0.0
    %885 = vmatpush1.msra.mxu0 0.0
    %886 = vmatprep.subr.mxu0 0.0
    %887 = vmatpush1.msra.mxu0 0.0
    %888 = vmatprep.subr.mxu0 0.0
    %889 = vmatpush1.msra.mxu0 0.0
    %890 = vmatprep.subr.mxu0 0.0
    %891 = vmatpush1.msra.mxu0 0.0
    %892 = vmatprep.subr.mxu0 0.0
    %893 = vmatpush1.msra.mxu0 0.0
    %894 = vmatprep.subr.mxu0 0.0
    %895 = vmatpush1.msra.mxu0 0.0
    %896 = vmatprep.subr.mxu0 0.0
    %897 = vmatpush1.msra.mxu0 0.0
    %898 = vmatprep.subr.mxu0 0.0
    %899 = vmatpush1.msra.mxu0 0.0
    %900 = vmatprep.subr.mxu0 0.0
    %901 = vmatpush1.msra.mxu0 0.0
    %902 = vmatprep.subr.mxu0 0.0
    %903 = vmatpush1.msra.mxu0 0.0
    %904 = vmatprep.subr.mxu0 0.0
    %905 = vmatpush1.msra.mxu0 0.0
    %906 = vmatprep.mubr.f32.mxu0 0.0
    %907 = vmatmul.mubr.f32.gmra.mrb[0].mxu0 %v840
    %v908 = vpop.f32.mrb[0].mxu0
    %v909 = vadd.f32 0.0, %v908
    %v910 = vpop.f32.mrb[0].mxu0
    %911 = vdwg.mxu0
    %v912 = vadd.f32 %v838, %v909
    %v913 = vxor.u32 %v912, 2147483648
    %v914 = vmul.f32 %v913, 1.442695
    %v915 = vpow.pop %v914
    %v916 = vadd.f32 %v915, 1.0
    %v917 = vrcp.pop %v916
    %v918 = vmul.f32 1.0, %v917
    %s919 = scalar_lea.vmem [#allocation6], 6
    %v920 = vld [vmem:[%s919] sm:$0x3]
    %921 = vmatprep.subr.mxu0 0.0
    %922 = vmatpush1.msra.mxu0 %v98
    %923 = vmatprep.subr.mxu0 0.0
    %924 = vmatpush1.msra.mxu0 %v99
    %925 = vmatprep.subr.mxu0 0.0
    %926 = vmatpush1.msra.mxu0 %v194
    %927 = vmatprep.subr.mxu0 0.0
    %928 = vmatpush1.msra.mxu0 0.0
    %929 = vmatprep.subr.mxu0 0.0
    %930 = vmatpush1.msra.mxu0 0.0
    %931 = vmatprep.subr.mxu0 0.0
    %932 = vmatpush1.msra.mxu0 0.0
    %933 = vmatprep.subr.mxu0 0.0
    %934 = vmatpush1.msra.mxu0 0.0
    %935 = vmatprep.subr.mxu0 0.0
    %936 = vmatpush1.msra.mxu0 0.0
    %937 = vmatprep.subr.mxu0 0.0
    %938 = vmatpush1.msra.mxu0 0.0
    %939 = vmatprep.subr.mxu0 0.0
    %940 = vmatpush1.msra.mxu0 0.0
    %941 = vmatprep.subr.mxu0 0.0
    %942 = vmatpush1.msra.mxu0 0.0
    %943 = vmatprep.subr.mxu0 0.0
    %944 = vmatpush1.msra.mxu0 0.0
    %945 = vmatprep.subr.mxu0 0.0
    %946 = vmatpush1.msra.mxu0 0.0
    %947 = vmatprep.subr.mxu0 0.0
    %948 = vmatpush1.msra.mxu0 0.0
    %949 = vmatprep.subr.mxu0 0.0
    %950 = vmatpush1.msra.mxu0 0.0
    %951 = vmatprep.subr.mxu0 0.0
    %952 = vmatpush1.msra.mxu0 0.0
    %953 = vmatprep.subr.mxu0 0.0
    %954 = vmatpush1.msra.mxu0 0.0
    %955 = vmatprep.subr.mxu0 0.0
    %956 = vmatpush1.msra.mxu0 0.0
    %957 = vmatprep.subr.mxu0 0.0
    %958 = vmatpush1.msra.mxu0 0.0
    %959 = vmatprep.subr.mxu0 0.0
    %960 = vmatpush1.msra.mxu0 0.0
    %961 = vmatprep.subr.mxu0 0.0
    %962 = vmatpush1.msra.mxu0 0.0
    %963 = vmatprep.subr.mxu0 0.0
    %964 = vmatpush1.msra.mxu0 0.0
    %965 = vmatprep.subr.mxu0 0.0
    %966 = vmatpush1.msra.mxu0 0.0
    %967 = vmatprep.subr.mxu0 0.0
    %968 = vmatpush1.msra.mxu0 0.0
    %969 = vmatprep.subr.mxu0 0.0
    %970 = vmatpush1.msra.mxu0 0.0
    %971 = vmatprep.subr.mxu0 0.0
    %972 = vmatpush1.msra.mxu0 0.0
    %973 = vmatprep.subr.mxu0 0.0
    %974 = vmatpush1.msra.mxu0 0.0
    %975 = vmatprep.subr.mxu0 0.0
    %976 = vmatpush1.msra.mxu0 0.0
    %977 = vmatprep.subr.mxu0 0.0
    %978 = vmatpush1.msra.mxu0 0.0
    %979 = vmatprep.subr.mxu0 0.0
    %980 = vmatpush1.msra.mxu0 0.0
    %981 = vmatprep.subr.mxu0 0.0
    %982 = vmatpush1.msra.mxu0 0.0
    %983 = vmatprep.subr.mxu0 0.0
    %984 = vmatpush1.msra.mxu0 0.0
    %985 = vmatprep.mubr.f32.mxu0 0.0
    %986 = vmatmul.mubr.f32.gmra.mrb[0].mxu0 %v840
    %v987 = vpop.f32.mrb[0].mxu0
    %v988 = vadd.f32 0.0, %v987
    %v989 = vpop.f32.mrb[0].mxu0
    %990 = vdwg.mxu0
    %v991 = vadd.f32 %v920, %v988
    %v992 = vxor.u32 %v991, 2147483648
    %v993 = vmul.f32 %v992, 1.442695
    %v994 = vpow.pop %v993
    %v995 = vadd.f32 %v994, 1.0
    %v996 = vrcp.pop %v995
    %v997 = vmul.f32 1.0, %v996
    %998 = vmatprep.subr.mxu0 0.0
    %999 = vmatpush1.msra.mxu0 %v101
    %1000 = vmatprep.subr.mxu0 0.0
    %1001 = vmatpush1.msra.mxu0 %v102
    %1002 = vmatprep.subr.mxu0 0.0
    %1003 = vmatpush1.msra.mxu0 %v280
    %1004 = vmatprep.subr.mxu0 0.0
    %1005 = vmatpush1.msra.mxu0 0.0
    %1006 = vmatprep.subr.mxu0 0.0
    %1007 = vmatpush1.msra.mxu0 0.0
    %1008 = vmatprep.subr.mxu0 0.0
    %1009 = vmatpush1.msra.mxu0 0.0
    %1010 = vmatprep.subr.mxu0 0.0
    %1011 = vmatpush1.msra.mxu0 0.0
    %1012 = vmatprep.subr.mxu0 0.0
    %1013 = vmatpush1.msra.mxu0 0.0
    %1014 = vmatprep.subr.mxu0 0.0
    %1015 = vmatpush1.msra.mxu0 0.0
    %1016 = vmatprep.subr.mxu0 0.0
    %1017 = vmatpush1.msra.mxu0 0.0
    %1018 = vmatprep.subr.mxu0 0.0
    %1019 = vmatpush1.msra.mxu0 0.0
    %1020 = vmatprep.subr.mxu0 0.0
    %1021 = vmatpush1.msra.mxu0 0.0
    %1022 = vmatprep.subr.mxu0 0.0
    %1023 = vmatpush1.msra.mxu0 0.0
    %1024 = vmatprep.subr.mxu0 0.0
    %1025 = vmatpush1.msra.mxu0 0.0
    %1026 = vmatprep.subr.mxu0 0.0
    %1027 = vmatpush1.msra.mxu0 0.0
    %1028 = vmatprep.subr.mxu0 0.0
    %1029 = vmatpush1.msra.mxu0 0.0
    %1030 = vmatprep.subr.mxu0 0.0
    %1031 = vmatpush1.msra.mxu0 0.0
    %1032 = vmatprep.subr.mxu0 0.0
    %1033 = vmatpush1.msra.mxu0 0.0
    %1034 = vmatprep.subr.mxu0 0.0
    %1035 = vmatpush1.msra.mxu0 0.0
    %1036 = vmatprep.subr.mxu0 0.0
    %1037 = vmatpush1.msra.mxu0 0.0
    %1038 = vmatprep.subr.mxu0 0.0
    %1039 = vmatpush1.msra.mxu0 0.0
    %1040 = vmatprep.subr.mxu0 0.0
    %1041 = vmatpush1.msra.mxu0 0.0
    %1042 = vmatprep.subr.mxu0 0.0
    %1043 = vmatpush1.msra.mxu0 0.0
    %1044 = vmatprep.subr.mxu0 0.0
    %1045 = vmatpush1.msra.mxu0 0.0
    %1046 = vmatprep.subr.mxu0 0.0
    %1047 = vmatpush1.msra.mxu0 0.0
    %1048 = vmatprep.subr.mxu0 0.0
    %1049 = vmatpush1.msra.mxu0 0.0
    %1050 = vmatprep.subr.mxu0 0.0
    %1051 = vmatpush1.msra.mxu0 0.0
    %1052 = vmatprep.subr.mxu0 0.0
    %1053 = vmatpush1.msra.mxu0 0.0
    %1054 = vmatprep.subr.mxu0 0.0
    %1055 = vmatpush1.msra.mxu0 0.0
    %1056 = vmatprep.subr.mxu0 0.0
    %1057 = vmatpush1.msra.mxu0 0.0
    %1058 = vmatprep.subr.mxu0 0.0
    %1059 = vmatpush1.msra.mxu0 0.0
    %1060 = vmatprep.subr.mxu0 0.0
    %1061 = vmatpush1.msra.mxu0 0.0
    %1062 = vmatprep.mubr.f32.mxu0 0.0
    %1063 = vmatmul.mubr.f32.gmra.mrb[0].mxu0 %v840
    %v1064 = vpop.f32.mrb[0].mxu0
    %v1065 = vadd.f32 %v277, %v1064
    %v1066 = vpop.f32.mrb[0].mxu0
    %1067 = vdwg.mxu0
    %s1068 = scalar_lea.vmem [#allocation8], 6
    %v1069 = vld [vmem:[%s1068] sm:$0x3]
    %v1070 = vmul.f32 %v918, %v1065
    %v1071 = vadd.f32 %v1069, %v1070
    %v1072 = vtanh.pop %v1071
    %v1073 = vsub.f32 %v836, %v1072
    %v1074 = vmul.f32 %v997, %v1073
    %v1075 = vadd.f32 %v1072, %v1074
    %s1076 = scalar_lea.vmem [#allocation4], 8
    %v1077 = vld [vmem:[%s1076] sm:$0x3]
    %v1079 = vsel %vm107, %v1075, 0
    %1081 = vmatprep.subr.mxu0 0.0
    %1082 = vmatpush1.msra.mxu0 %v95
    %1083 = vmatprep.subr.mxu0 0.0
    %1084 = vmatpush1.msra.mxu0 %v96
    %1085 = vmatprep.subr.mxu0 0.0
    %1086 = vmatpush1.msra.mxu0 %v113
    %1087 = vmatprep.subr.mxu0 0.0
    %1088 = vmatpush1.msra.mxu0 0.0
    %1089 = vmatprep.subr.mxu0 0.0
    %1090 = vmatpush1.msra.mxu0 0.0
    %1091 = vmatprep.subr.mxu0 0.0
    %1092 = vmatpush1.msra.mxu0 0.0
    %1093 = vmatprep.subr.mxu0 0.0
    %1094 = vmatpush1.msra.mxu0 0.0
    %1095 = vmatprep.subr.mxu0 0.0
    %1096 = vmatpush1.msra.mxu0 0.0
    %1097 = vmatprep.subr.mxu0 0.0
    %1098 = vmatpush1.msra.mxu0 0.0
    %1099 = vmatprep.subr.mxu0 0.0
    %1100 = vmatpush1.msra.mxu0 0.0
    %1101 = vmatprep.subr.mxu0 0.0
    %1102 = vmatpush1.msra.mxu0 0.0
    %1103 = vmatprep.subr.mxu0 0.0
    %1104 = vmatpush1.msra.mxu0 0.0
    %1105 = vmatprep.subr.mxu0 0.0
    %1106 = vmatpush1.msra.mxu0 0.0
    %1107 = vmatprep.subr.mxu0 0.0
    %1108 = vmatpush1.msra.mxu0 0.0
    %1109 = vmatprep.subr.mxu0 0.0
    %1110 = vmatpush1.msra.mxu0 0.0
    %1111 = vmatprep.subr.mxu0 0.0
    %1112 = vmatpush1.msra.mxu0 0.0
    %1113 = vmatprep.subr.mxu0 0.0
    %1114 = vmatpush1.msra.mxu0 0.0
    %1115 = vmatprep.subr.mxu0 0.0
    %1116 = vmatpush1.msra.mxu0 0.0
    %1117 = vmatprep.subr.mxu0 0.0
    %1118 = vmatpush1.msra.mxu0 0.0
    %1119 = vmatprep.subr.mxu0 0.0
    %1120 = vmatpush1.msra.mxu0 0.0
    %1121 = vmatprep.subr.mxu0 0.0
    %1122 = vmatpush1.msra.mxu0 0.0
    %1123 = vmatprep.subr.mxu0 0.0
    %1124 = vmatpush1.msra.mxu0 0.0
    %1125 = vmatprep.subr.mxu0 0.0
    %1126 = vmatpush1.msra.mxu0 0.0
    %1127 = vmatprep.subr.mxu0 0.0
    %1128 = vmatpush1.msra.mxu0 0.0
    %1129 = vmatprep.subr.mxu0 0.0
    %1130 = vmatpush1.msra.mxu0 0.0
    %1131 = vmatprep.subr.mxu0 0.0
    %1132 = vmatpush1.msra.mxu0 0.0
    %1133 = vmatprep.subr.mxu0 0.0
    %1134 = vmatpush1.msra.mxu0 0.0
    %1135 = vmatprep.subr.mxu0 0.0
    %1136 = vmatpush1.msra.mxu0 0.0
    %1137 = vmatprep.subr.mxu0 0.0
    %1138 = vmatpush1.msra.mxu0 0.0
    %1139 = vmatprep.subr.mxu0 0.0
    %1140 = vmatpush1.msra.mxu0 0.0
    %1141 = vmatprep.subr.mxu0 0.0
    %1142 = vmatpush1.msra.mxu0 0.0
    %1143 = vmatprep.subr.mxu0 0.0
    %1144 = vmatpush1.msra.mxu0 0.0
    %1145 = vmatprep.mubr.f32.mxu0 0.0
    %1146 = vmatmul.mubr.f32.gmra.mrb[0].mxu0 %v1079
    %v1147 = vpop.f32.mrb[0].mxu0
    %v1148 = vadd.f32 0.0, %v1147
    %v1149 = vpop.f32.mrb[0].mxu0
    %1150 = vdwg.mxu0
    %v1151 = vadd.f32 %v1077, %v1148
    %v1152 = vxor.u32 %v1151, 2147483648
    %v1153 = vmul.f32 %v1152, 1.442695
    %v1154 = vpow.pop %v1153
    %v1155 = vadd.f32 %v1154, 1.0
    %v1156 = vrcp.pop %v1155
    %v1157 = vmul.f32 1.0, %v1156
    %s1158 = scalar_lea.vmem [#allocation6], 8
    %v1159 = vld [vmem:[%s1158] sm:$0x3]
    %1160 = vmatprep.subr.mxu0 0.0
    %1161 = vmatpush1.msra.mxu0 %v98
    %1162 = vmatprep.subr.mxu0 0.0
    %1163 = vmatpush1.msra.mxu0 %v99
    %1164 = vmatprep.subr.mxu0 0.0
    %1165 = vmatpush1.msra.mxu0 %v194
    %1166 = vmatprep.subr.mxu0 0.0
    %1167 = vmatpush1.msra.mxu0 0.0
    %1168 = vmatprep.subr.mxu0 0.0
    %1169 = vmatpush1.msra.mxu0 0.0
    %1170 = vmatprep.subr.mxu0 0.0
    %1171 = vmatpush1.msra.mxu0 0.0
    %1172 = vmatprep.subr.mxu0 0.0
    %1173 = vmatpush1.msra.mxu0 0.0
    %1174 = vmatprep.subr.mxu0 0.0
    %1175 = vmatpush1.msra.mxu0 0.0
    %1176 = vmatprep.subr.mxu0 0.0
    %1177 = vmatpush1.msra.mxu0 0.0
    %1178 = vmatprep.subr.mxu0 0.0
    %1179 = vmatpush1.msra.mxu0 0.0
    %1180 = vmatprep.subr.mxu0 0.0
    %1181 = vmatpush1.msra.mxu0 0.0
    %1182 = vmatprep.subr.mxu0 0.0
    %1183 = vmatpush1.msra.mxu0 0.0
    %1184 = vmatprep.subr.mxu0 0.0
    %1185 = vmatpush1.msra.mxu0 0.0
    %1186 = vmatprep.subr.mxu0 0.0
    %1187 = vmatpush1.msra.mxu0 0.0
    %1188 = vmatprep.subr.mxu0 0.0
    %1189 = vmatpush1.msra.mxu0 0.0
    %1190 = vmatprep.subr.mxu0 0.0
    %1191 = vmatpush1.msra.mxu0 0.0
    %1192 = vmatprep.subr.mxu0 0.0
    %1193 = vmatpush1.msra.mxu0 0.0
    %1194 = vmatprep.subr.mxu0 0.0
    %1195 = vmatpush1.msra.mxu0 0.0
    %1196 = vmatprep.subr.mxu0 0.0
    %1197 = vmatpush1.msra.mxu0 0.0
    %1198 = vmatprep.subr.mxu0 0.0
    %1199 = vmatpush1.msra.mxu0 0.0
    %1200 = vmatprep.subr.mxu0 0.0
    %1201 = vmatpush1.msra.mxu0 0.0
    %1202 = vmatprep.subr.mxu0 0.0
    %1203 = vmatpush1.msra.mxu0 0.0
    %1204 = vmatprep.subr.mxu0 0.0
    %1205 = vmatpush1.msra.mxu0 0.0
    %1206 = vmatprep.subr.mxu0 0.0
    %1207 = vmatpush1.msra.mxu0 0.0
    %1208 = vmatprep.subr.mxu0 0.0
    %1209 = vmatpush1.msra.mxu0 0.0
    %1210 = vmatprep.subr.mxu0 0.0
    %1211 = vmatpush1.msra.mxu0 0.0
    %1212 = vmatprep.subr.mxu0 0.0
    %1213 = vmatpush1.msra.mxu0 0.0
    %1214 = vmatprep.subr.mxu0 0.0
    %1215 = vmatpush1.msra.mxu0 0.0
    %1216 = vmatprep.subr.mxu0 0.0
    %1217 = vmatpush1.msra.mxu0 0.0
    %1218 = vmatprep.subr.mxu0 0.0
    %1219 = vmatpush1.msra.mxu0 0.0
    %1220 = vmatprep.subr.mxu0 0.0
    %1221 = vmatpush1.msra.mxu0 0.0
    %1222 = vmatprep.subr.mxu0 0.0
    %1223 = vmatpush1.msra.mxu0 0.0
    %1224 = vmatprep.mubr.f32.mxu0 0.0
    %1225 = vmatmul.mubr.f32.gmra.mrb[0].mxu0 %v1079
    %v1226 = vpop.f32.mrb[0].mxu0
    %v1227 = vadd.f32 0.0, %v1226
    %v1228 = vpop.f32.mrb[0].mxu0
    %1229 = vdwg.mxu0
    %v1230 = vadd.f32 %v1159, %v1227
    %v1231 = vxor.u32 %v1230, 2147483648
    %v1232 = vmul.f32 %v1231, 1.442695
    %v1233 = vpow.pop %v1232
    %v1234 = vadd.f32 %v1233, 1.0
    %v1235 = vrcp.pop %v1234
    %v1236 = vmul.f32 1.0, %v1235
    %1237 = vmatprep.subr.mxu0 0.0
    %1238 = vmatpush1.msra.mxu0 %v101
    %1239 = vmatprep.subr.mxu0 0.0
    %1240 = vmatpush1.msra.mxu0 %v102
    %1241 = vmatprep.subr.mxu0 0.0
    %1242 = vmatpush1.msra.mxu0 %v280
    %1243 = vmatprep.subr.mxu0 0.0
    %1244 = vmatpush1.msra.mxu0 0.0
    %1245 = vmatprep.subr.mxu0 0.0
    %1246 = vmatpush1.msra.mxu0 0.0
    %1247 = vmatprep.subr.mxu0 0.0
    %1248 = vmatpush1.msra.mxu0 0.0
    %1249 = vmatprep.subr.mxu0 0.0
    %1250 = vmatpush1.msra.mxu0 0.0
    %1251 = vmatprep.subr.mxu0 0.0
    %1252 = vmatpush1.msra.mxu0 0.0
    %1253 = vmatprep.subr.mxu0 0.0
    %1254 = vmatpush1.msra.mxu0 0.0
    %1255 = vmatprep.subr.mxu0 0.0
    %1256 = vmatpush1.msra.mxu0 0.0
    %1257 = vmatprep.subr.mxu0 0.0
    %1258 = vmatpush1.msra.mxu0 0.0
    %1259 = vmatprep.subr.mxu0 0.0
    %1260 = vmatpush1.msra.mxu0 0.0
    %1261 = vmatprep.subr.mxu0 0.0
    %1262 = vmatpush1.msra.mxu0 0.0
    %1263 = vmatprep.subr.mxu0 0.0
    %1264 = vmatpush1.msra.mxu0 0.0
    %1265 = vmatprep.subr.mxu0 0.0
    %1266 = vmatpush1.msra.mxu0 0.0
    %1267 = vmatprep.subr.mxu0 0.0
    %1268 = vmatpush1.msra.mxu0 0.0
    %1269 = vmatprep.subr.mxu0 0.0
    %1270 = vmatpush1.msra.mxu0 0.0
    %1271 = vmatprep.subr.mxu0 0.0
    %1272 = vmatpush1.msra.mxu0 0.0
    %1273 = vmatprep.subr.mxu0 0.0
    %1274 = vmatpush1.msra.mxu0 0.0
    %1275 = vmatprep.subr.mxu0 0.0
    %1276 = vmatpush1.msra.mxu0 0.0
    %1277 = vmatprep.subr.mxu0 0.0
    %1278 = vmatpush1.msra.mxu0 0.0
    %1279 = vmatprep.subr.mxu0 0.0
    %1280 = vmatpush1.msra.mxu0 0.0
    %1281 = vmatprep.subr.mxu0 0.0
    %1282 = vmatpush1.msra.mxu0 0.0
    %1283 = vmatprep.subr.mxu0 0.0
    %1284 = vmatpush1.msra.mxu0 0.0
    %1285 = vmatprep.subr.mxu0 0.0
    %1286 = vmatpush1.msra.mxu0 0.0
    %1287 = vmatprep.subr.mxu0 0.0
    %1288 = vmatpush1.msra.mxu0 0.0
    %1289 = vmatprep.subr.mxu0 0.0
    %1290 = vmatpush1.msra.mxu0 0.0
    %1291 = vmatprep.subr.mxu0 0.0
    %1292 = vmatpush1.msra.mxu0 0.0
    %1293 = vmatprep.subr.mxu0 0.0
    %1294 = vmatpush1.msra.mxu0 0.0
    %1295 = vmatprep.subr.mxu0 0.0
    %1296 = vmatpush1.msra.mxu0 0.0
    %1297 = vmatprep.subr.mxu0 0.0
    %1298 = vmatpush1.msra.mxu0 0.0
    %1299 = vmatprep.subr.mxu0 0.0
    %1300 = vmatpush1.msra.mxu0 0.0
    %1301 = vmatprep.mubr.f32.mxu0 0.0
    %1302 = vmatmul.mubr.f32.gmra.mrb[0].mxu0 %v1079
    %v1303 = vpop.f32.mrb[0].mxu0
    %v1304 = vadd.f32 %v277, %v1303
    %v1305 = vpop.f32.mrb[0].mxu0
    %1306 = vdwg.mxu0
    %s1307 = scalar_lea.vmem [#allocation8], 8
    %v1308 = vld [vmem:[%s1307] sm:$0x3]
    %v1309 = vmul.f32 %v1157, %v1304
    %v1310 = vadd.f32 %v1308, %v1309
    %v1311 = vtanh.pop %v1310
    %v1312 = vsub.f32 %v1075, %v1311
    %v1313 = vmul.f32 %v1236, %v1312
    %v1314 = vadd.f32 %v1311, %v1313
    %s1315 = scalar_lea.vmem [#allocation4], 10
    %v1316 = vld [vmem:[%s1315] sm:$0x3]
    %v1318 = vsel %vm107, %v1314, 0
    %1320 = vmatprep.subr.mxu0 0.0
    %1321 = vmatpush1.msra.mxu0 %v95
    %1322 = vmatprep.subr.mxu0 0.0
    %1323 = vmatpush1.msra.mxu0 %v96
    %1324 = vmatprep.subr.mxu0 0.0
    %1325 = vmatpush1.msra.mxu0 %v113
    %1326 = vmatprep.subr.mxu0 0.0
    %1327 = vmatpush1.msra.mxu0 0.0
    %1328 = vmatprep.subr.mxu0 0.0
    %1329 = vmatpush1.msra.mxu0 0.0
    %1330 = vmatprep.subr.mxu0 0.0
    %1331 = vmatpush1.msra.mxu0 0.0
    %1332 = vmatprep.subr.mxu0 0.0
    %1333 = vmatpush1.msra.mxu0 0.0
    %1334 = vmatprep.subr.mxu0 0.0
    %1335 = vmatpush1.msra.mxu0 0.0
    %1336 = vmatprep.subr.mxu0 0.0
    %1337 = vmatpush1.msra.mxu0 0.0
    %1338 = vmatprep.subr.mxu0 0.0
    %1339 = vmatpush1.msra.mxu0 0.0
    %1340 = vmatprep.subr.mxu0 0.0
    %1341 = vmatpush1.msra.mxu0 0.0
    %1342 = vmatprep.subr.mxu0 0.0
    %1343 = vmatpush1.msra.mxu0 0.0
    %1344 = vmatprep.subr.mxu0 0.0
    %1345 = vmatpush1.msra.mxu0 0.0
    %1346 = vmatprep.subr.mxu0 0.0
    %1347 = vmatpush1.msra.mxu0 0.0
    %1348 = vmatprep.subr.mxu0 0.0
    %1349 = vmatpush1.msra.mxu0 0.0
    %1350 = vmatprep.subr.mxu0 0.0
    %1351 = vmatpush1.msra.mxu0 0.0
    %1352 = vmatprep.subr.mxu0 0.0
    %1353 = vmatpush1.msra.mxu0 0.0
    %1354 = vmatprep.subr.mxu0 0.0
    %1355 = vmatpush1.msra.mxu0 0.0
    %1356 = vmatprep.subr.mxu0 0.0
    %1357 = vmatpush1.msra.mxu0 0.0
    %1358 = vmatprep.subr.mxu0 0.0
    %1359 = vmatpush1.msra.mxu0 0.0
    %1360 = vmatprep.subr.mxu0 0.0
    %1361 = vmatpush1.msra.mxu0 0.0
    %1362 = vmatprep.subr.mxu0 0.0
    %1363 = vmatpush1.msra.mxu0 0.0
    %1364 = vmatprep.subr.mxu0 0.0
    %1365 = vmatpush1.msra.mxu0 0.0
    %1366 = vmatprep.subr.mxu0 0.0
    %1367 = vmatpush1.msra.mxu0 0.0
    %1368 = vmatprep.subr.mxu0 0.0
    %1369 = vmatpush1.msra.mxu0 0.0
    %1370 = vmatprep.subr.mxu0 0.0
    %1371 = vmatpush1.msra.mxu0 0.0
    %1372 = vmatprep.subr.mxu0 0.0
    %1373 = vmatpush1.msra.mxu0 0.0
    %1374 = vmatprep.subr.mxu0 0.0
    %1375 = vmatpush1.msra.mxu0 0.0
    %1376 = vmatprep.subr.mxu0 0.0
    %1377 = vmatpush1.msra.mxu0 0.0
    %1378 = vmatprep.subr.mxu0 0.0
    %1379 = vmatpush1.msra.mxu0 0.0
    %1380 = vmatprep.subr.mxu0 0.0
    %1381 = vmatpush1.msra.mxu0 0.0
    %1382 = vmatprep.subr.mxu0 0.0
    %1383 = vmatpush1.msra.mxu0 0.0
    %1384 = vmatprep.mubr.f32.mxu0 0.0
    %1385 = vmatmul.mubr.f32.gmra.mrb[0].mxu0 %v1318
    %v1386 = vpop.f32.mrb[0].mxu0
    %v1387 = vadd.f32 0.0, %v1386
    %v1388 = vpop.f32.mrb[0].mxu0
    %1389 = vdwg.mxu0
    %v1390 = vadd.f32 %v1316, %v1387
    %v1391 = vxor.u32 %v1390, 2147483648
    %v1392 = vmul.f32 %v1391, 1.442695
    %v1393 = vpow.pop %v1392
    %v1394 = vadd.f32 %v1393, 1.0
    %v1395 = vrcp.pop %v1394
    %v1396 = vmul.f32 1.0, %v1395
    %s1397 = scalar_lea.vmem [#allocation6], 10
    %v1398 = vld [vmem:[%s1397] sm:$0x3]
    %1399 = vmatprep.subr.mxu0 0.0
    %1400 = vmatpush1.msra.mxu0 %v98
    %1401 = vmatprep.subr.mxu0 0.0
    %1402 = vmatpush1.msra.mxu0 %v99
    %1403 = vmatprep.subr.mxu0 0.0
    %1404 = vmatpush1.msra.mxu0 %v194
    %1405 = vmatprep.subr.mxu0 0.0
    %1406 = vmatpush1.msra.mxu0 0.0
    %1407 = vmatprep.subr.mxu0 0.0
    %1408 = vmatpush1.msra.mxu0 0.0
    %1409 = vmatprep.subr.mxu0 0.0
    %1410 = vmatpush1.msra.mxu0 0.0
    %1411 = vmatprep.subr.mxu0 0.0
    %1412 = vmatpush1.msra.mxu0 0.0
    %1413 = vmatprep.subr.mxu0 0.0
    %1414 = vmatpush1.msra.mxu0 0.0
    %1415 = vmatprep.subr.mxu0 0.0
    %1416 = vmatpush1.msra.mxu0 0.0
    %1417 = vmatprep.subr.mxu0 0.0
    %1418 = vmatpush1.msra.mxu0 0.0
    %1419 = vmatprep.subr.mxu0 0.0
    %1420 = vmatpush1.msra.mxu0 0.0
    %1421 = vmatprep.subr.mxu0 0.0
    %1422 = vmatpush1.msra.mxu0 0.0
    %1423 = vmatprep.subr.mxu0 0.0
    %1424 = vmatpush1.msra.mxu0 0.0
    %1425 = vmatprep.subr.mxu0 0.0
    %1426 = vmatpush1.msra.mxu0 0.0
    %1427 = vmatprep.subr.mxu0 0.0
    %1428 = vmatpush1.msra.mxu0 0.0
    %1429 = vmatprep.subr.mxu0 0.0
    %1430 = vmatpush1.msra.mxu0 0.0
    %1431 = vmatprep.subr.mxu0 0.0
    %1432 = vmatpush1.msra.mxu0 0.0
    %1433 = vmatprep.subr.mxu0 0.0
    %1434 = vmatpush1.msra.mxu0 0.0
    %1435 = vmatprep.subr.mxu0 0.0
    %1436 = vmatpush1.msra.mxu0 0.0
    %1437 = vmatprep.subr.mxu0 0.0
    %1438 = vmatpush1.msra.mxu0 0.0
    %1439 = vmatprep.subr.mxu0 0.0
    %1440 = vmatpush1.msra.mxu0 0.0
    %1441 = vmatprep.subr.mxu0 0.0
    %1442 = vmatpush1.msra.mxu0 0.0
    %1443 = vmatprep.subr.mxu0 0.0
    %1444 = vmatpush1.msra.mxu0 0.0
    %1445 = vmatprep.subr.mxu0 0.0
    %1446 = vmatpush1.msra.mxu0 0.0
    %1447 = vmatprep.subr.mxu0 0.0
    %1448 = vmatpush1.msra.mxu0 0.0
    %1449 = vmatprep.subr.mxu0 0.0
    %1450 = vmatpush1.msra.mxu0 0.0
    %1451 = vmatprep.subr.mxu0 0.0
    %1452 = vmatpush1.msra.mxu0 0.0
    %1453 = vmatprep.subr.mxu0 0.0
    %1454 = vmatpush1.msra.mxu0 0.0
    %1455 = vmatprep.subr.mxu0 0.0
    %1456 = vmatpush1.msra.mxu0 0.0
    %1457 = vmatprep.subr.mxu0 0.0
    %1458 = vmatpush1.msra.mxu0 0.0
    %1459 = vmatprep.subr.mxu0 0.0
    %1460 = vmatpush1.msra.mxu0 0.0
    %1461 = vmatprep.subr.mxu0 0.0
    %1462 = vmatpush1.msra.mxu0 0.0
    %1463 = vmatprep.mubr.f32.mxu0 0.0
    %1464 = vmatmul.mubr.f32.gmra.mrb[0].mxu0 %v1318
    %v1465 = vpop.f32.mrb[0].mxu0
    %v1466 = vadd.f32 0.0, %v1465
    %v1467 = vpop.f32.mrb[0].mxu0
    %1468 = vdwg.mxu0
    %v1469 = vadd.f32 %v1398, %v1466
    %v1470 = vxor.u32 %v1469, 2147483648
    %v1471 = vmul.f32 %v1470, 1.442695
    %v1472 = vpow.pop %v1471
    %v1473 = vadd.f32 %v1472, 1.0
    %v1474 = vrcp.pop %v1473
    %v1475 = vmul.f32 1.0, %v1474
    %1476 = vmatprep.subr.mxu0 0.0
    %1477 = vmatpush1.msra.mxu0 %v101
    %1478 = vmatprep.subr.mxu0 0.0
    %1479 = vmatpush1.msra.mxu0 %v102
    %1480 = vmatprep.subr.mxu0 0.0
    %1481 = vmatpush1.msra.mxu0 %v280
    %1482 = vmatprep.subr.mxu0 0.0
    %1483 = vmatpush1.msra.mxu0 0.0
    %1484 = vmatprep.subr.mxu0 0.0
    %1485 = vmatpush1.msra.mxu0 0.0
    %1486 = vmatprep.subr.mxu0 0.0
    %1487 = vmatpush1.msra.mxu0 0.0
    %1488 = vmatprep.subr.mxu0 0.0
    %1489 = vmatpush1.msra.mxu0 0.0
    %1490 = vmatprep.subr.mxu0 0.0
    %1491 = vmatpush1.msra.mxu0 0.0
    %1492 = vmatprep.subr.mxu0 0.0
    %1493 = vmatpush1.msra.mxu0 0.0
    %1494 = vmatprep.subr.mxu0 0.0
    %1495 = vmatpush1.msra.mxu0 0.0
    %1496 = vmatprep.subr.mxu0 0.0
    %1497 = vmatpush1.msra.mxu0 0.0
    %1498 = vmatprep.subr.mxu0 0.0
    %1499 = vmatpush1.msra.mxu0 0.0
    %1500 = vmatprep.subr.mxu0 0.0
    %1501 = vmatpush1.msra.mxu0 0.0
    %1502 = vmatprep.subr.mxu0 0.0
    %1503 = vmatpush1.msra.mxu0 0.0
    %1504 = vmatprep.subr.mxu0 0.0
    %1505 = vmatpush1.msra.mxu0 0.0
    %1506 = vmatprep.subr.mxu0 0.0
    %1507 = vmatpush1.msra.mxu0 0.0
    %1508 = vmatprep.subr.mxu0 0.0
    %1509 = vmatpush1.msra.mxu0 0.0
    %1510 = vmatprep.subr.mxu0 0.0
    %1511 = vmatpush1.msra.mxu0 0.0
    %1512 = vmatprep.subr.mxu0 0.0
    %1513 = vmatpush1.msra.mxu0 0.0
    %1514 = vmatprep.subr.mxu0 0.0
    %1515 = vmatpush1.msra.mxu0 0.0
    %1516 = vmatprep.subr.mxu0 0.0
    %1517 = vmatpush1.msra.mxu0 0.0
    %1518 = vmatprep.subr.mxu0 0.0
    %1519 = vmatpush1.msra.mxu0 0.0
    %1520 = vmatprep.subr.mxu0 0.0
    %1521 = vmatpush1.msra.mxu0 0.0
    %1522 = vmatprep.subr.mxu0 0.0
    %1523 = vmatpush1.msra.mxu0 0.0
    %1524 = vmatprep.subr.mxu0 0.0
    %1525 = vmatpush1.msra.mxu0 0.0
    %1526 = vmatprep.subr.mxu0 0.0
    %1527 = vmatpush1.msra.mxu0 0.0
    %1528 = vmatprep.subr.mxu0 0.0
    %1529 = vmatpush1.msra.mxu0 0.0
    %1530 = vmatprep.subr.mxu0 0.0
    %1531 = vmatpush1.msra.mxu0 0.0
    %1532 = vmatprep.subr.mxu0 0.0
    %1533 = vmatpush1.msra.mxu0 0.0
    %1534 = vmatprep.subr.mxu0 0.0
    %1535 = vmatpush1.msra.mxu0 0.0
    %1536 = vmatprep.subr.mxu0 0.0
    %1537 = vmatpush1.msra.mxu0 0.0
    %1538 = vmatprep.subr.mxu0 0.0
    %1539 = vmatpush1.msra.mxu0 0.0
    %1540 = vmatprep.mubr.f32.mxu0 0.0
    %1541 = vmatmul.mubr.f32.gmra.mrb[0].mxu0 %v1318
    %v1542 = vpop.f32.mrb[0].mxu0
    %v1543 = vadd.f32 %v277, %v1542
    %v1544 = vpop.f32.mrb[0].mxu0
    %1545 = vdwg.mxu0
    %s1546 = scalar_lea.vmem [#allocation8], 10
    %v1547 = vld [vmem:[%s1546] sm:$0x3]
    %v1548 = vmul.f32 %v1396, %v1543
    %v1549 = vadd.f32 %v1547, %v1548
    %v1550 = vtanh.pop %v1549
    %v1551 = vsub.f32 %v1314, %v1550
    %v1552 = vmul.f32 %v1475, %v1551
    %v1553 = vadd.f32 %v1550, %v1552
    %s1554 = scalar_lea.vmem [#allocation4], 12
    %v1555 = vld [vmem:[%s1554] sm:$0x3]
    %v1557 = vsel %vm107, %v1553, 0
    %1559 = vmatprep.subr.mxu0 0.0
    %1560 = vmatpush1.msra.mxu0 %v95
    %1561 = vmatprep.subr.mxu0 0.0
    %1562 = vmatpush1.msra.mxu0 %v96
    %1563 = vmatprep.subr.mxu0 0.0
    %1564 = vmatpush1.msra.mxu0 %v113
    %1565 = vmatprep.subr.mxu0 0.0
    %1566 = vmatpush1.msra.mxu0 0.0
    %1567 = vmatprep.subr.mxu0 0.0
    %1568 = vmatpush1.msra.mxu0 0.0
    %1569 = vmatprep.subr.mxu0 0.0
    %1570 = vmatpush1.msra.mxu0 0.0
    %1571 = vmatprep.subr.mxu0 0.0
    %1572 = vmatpush1.msra.mxu0 0.0
    %1573 = vmatprep.subr.mxu0 0.0
    %1574 = vmatpush1.msra.mxu0 0.0
    %1575 = vmatprep.subr.mxu0 0.0
    %1576 = vmatpush1.msra.mxu0 0.0
    %1577 = vmatprep.subr.mxu0 0.0
    %1578 = vmatpush1.msra.mxu0 0.0
    %1579 = vmatprep.subr.mxu0 0.0
    %1580 = vmatpush1.msra.mxu0 0.0
    %1581 = vmatprep.subr.mxu0 0.0
    %1582 = vmatpush1.msra.mxu0 0.0
    %1583 = vmatprep.subr.mxu0 0.0
    %1584 = vmatpush1.msra.mxu0 0.0
    %1585 = vmatprep.subr.mxu0 0.0
    %1586 = vmatpush1.msra.mxu0 0.0
    %1587 = vmatprep.subr.mxu0 0.0
    %1588 = vmatpush1.msra.mxu0 0.0
    %1589 = vmatprep.subr.mxu0 0.0
    %1590 = vmatpush1.msra.mxu0 0.0
    %1591 = vmatprep.subr.mxu0 0.0
    %1592 = vmatpush1.msra.mxu0 0.0
    %1593 = vmatprep.subr.mxu0 0.0
    %1594 = vmatpush1.msra.mxu0 0.0
    %1595 = vmatprep.subr.mxu0 0.0
    %1596 = vmatpush1.msra.mxu0 0.0
    %1597 = vmatprep.subr.mxu0 0.0
    %1598 = vmatpush1.msra.mxu0 0.0
    %1599 = vmatprep.subr.mxu0 0.0
    %1600 = vmatpush1.msra.mxu0 0.0
    %1601 = vmatprep.subr.mxu0 0.0
    %1602 = vmatpush1.msra.mxu0 0.0
    %1603 = vmatprep.subr.mxu0 0.0
    %1604 = vmatpush1.msra.mxu0 0.0
    %1605 = vmatprep.subr.mxu0 0.0
    %1606 = vmatpush1.msra.mxu0 0.0
    %1607 = vmatprep.subr.mxu0 0.0
    %1608 = vmatpush1.msra.mxu0 0.0
    %1609 = vmatprep.subr.mxu0 0.0
    %1610 = vmatpush1.msra.mxu0 0.0
    %1611 = vmatprep.subr.mxu0 0.0
    %1612 = vmatpush1.msra.mxu0 0.0
    %1613 = vmatprep.subr.mxu0 0.0
    %1614 = vmatpush1.msra.mxu0 0.0
    %1615 = vmatprep.subr.mxu0 0.0
    %1616 = vmatpush1.msra.mxu0 0.0
    %1617 = vmatprep.subr.mxu0 0.0
    %1618 = vmatpush1.msra.mxu0 0.0
    %1619 = vmatprep.subr.mxu0 0.0
    %1620 = vmatpush1.msra.mxu0 0.0
    %1621 = vmatprep.subr.mxu0 0.0
    %1622 = vmatpush1.msra.mxu0 0.0
    %1623 = vmatprep.mubr.f32.mxu0 0.0
    %1624 = vmatmul.mubr.f32.gmra.mrb[0].mxu0 %v1557
    %v1625 = vpop.f32.mrb[0].mxu0
    %v1626 = vadd.f32 0.0, %v1625
    %v1627 = vpop.f32.mrb[0].mxu0
    %1628 = vdwg.mxu0
    %v1629 = vadd.f32 %v1555, %v1626
    %v1630 = vxor.u32 %v1629, 2147483648
    %v1631 = vmul.f32 %v1630, 1.442695
    %v1632 = vpow.pop %v1631
    %v1633 = vadd.f32 %v1632, 1.0
    %v1634 = vrcp.pop %v1633
    %v1635 = vmul.f32 1.0, %v1634
    %s1636 = scalar_lea.vmem [#allocation6], 12
    %v1637 = vld [vmem:[%s1636] sm:$0x3]
    %1638 = vmatprep.subr.mxu0 0.0
    %1639 = vmatpush1.msra.mxu0 %v98
    %1640 = vmatprep.subr.mxu0 0.0
    %1641 = vmatpush1.msra.mxu0 %v99
    %1642 = vmatprep.subr.mxu0 0.0
    %1643 = vmatpush1.msra.mxu0 %v194
    %1644 = vmatprep.subr.mxu0 0.0
    %1645 = vmatpush1.msra.mxu0 0.0
    %1646 = vmatprep.subr.mxu0 0.0
    %1647 = vmatpush1.msra.mxu0 0.0
    %1648 = vmatprep.subr.mxu0 0.0
    %1649 = vmatpush1.msra.mxu0 0.0
    %1650 = vmatprep.subr.mxu0 0.0
    %1651 = vmatpush1.msra.mxu0 0.0
    %1652 = vmatprep.subr.mxu0 0.0
    %1653 = vmatpush1.msra.mxu0 0.0
    %1654 = vmatprep.subr.mxu0 0.0
    %1655 = vmatpush1.msra.mxu0 0.0
    %1656 = vmatprep.subr.mxu0 0.0
    %1657 = vmatpush1.msra.mxu0 0.0
    %1658 = vmatprep.subr.mxu0 0.0
    %1659 = vmatpush1.msra.mxu0 0.0
    %1660 = vmatprep.subr.mxu0 0.0
    %1661 = vmatpush1.msra.mxu0 0.0
    %1662 = vmatprep.subr.mxu0 0.0
    %1663 = vmatpush1.msra.mxu0 0.0
    %1664 = vmatprep.subr.mxu0 0.0
    %1665 = vmatpush1.msra.mxu0 0.0
    %1666 = vmatprep.subr.mxu0 0.0
    %1667 = vmatpush1.msra.mxu0 0.0
    %1668 = vmatprep.subr.mxu0 0.0
    %1669 = vmatpush1.msra.mxu0 0.0
    %1670 = vmatprep.subr.mxu0 0.0
    %1671 = vmatpush1.msra.mxu0 0.0
    %1672 = vmatprep.subr.mxu0 0.0
    %1673 = vmatpush1.msra.mxu0 0.0
    %1674 = vmatprep.subr.mxu0 0.0
    %1675 = vmatpush1.msra.mxu0 0.0
    %1676 = vmatprep.subr.mxu0 0.0
    %1677 = vmatpush1.msra.mxu0 0.0
    %1678 = vmatprep.subr.mxu0 0.0
    %1679 = vmatpush1.msra.mxu0 0.0
    %1680 = vmatprep.subr.mxu0 0.0
    %1681 = vmatpush1.msra.mxu0 0.0
    %1682 = vmatprep.subr.mxu0 0.0
    %1683 = vmatpush1.msra.mxu0 0.0
    %1684 = vmatprep.subr.mxu0 0.0
    %1685 = vmatpush1.msra.mxu0 0.0
    %1686 = vmatprep.subr.mxu0 0.0
    %1687 = vmatpush1.msra.mxu0 0.0
    %1688 = vmatprep.subr.mxu0 0.0
    %1689 = vmatpush1.msra.mxu0 0.0
    %1690 = vmatprep.subr.mxu0 0.0
    %1691 = vmatpush1.msra.mxu0 0.0
    %1692 = vmatprep.subr.mxu0 0.0
    %1693 = vmatpush1.msra.mxu0 0.0
    %1694 = vmatprep.subr.mxu0 0.0
    %1695 = vmatpush1.msra.mxu0 0.0
    %1696 = vmatprep.subr.mxu0 0.0
    %1697 = vmatpush1.msra.mxu0 0.0
    %1698 = vmatprep.subr.mxu0 0.0
    %1699 = vmatpush1.msra.mxu0 0.0
    %1700 = vmatprep.subr.mxu0 0.0
    %1701 = vmatpush1.msra.mxu0 0.0
    %1702 = vmatprep.mubr.f32.mxu0 0.0
    %1703 = vmatmul.mubr.f32.gmra.mrb[0].mxu0 %v1557
    %v1704 = vpop.f32.mrb[0].mxu0
    %v1705 = vadd.f32 0.0, %v1704
    %v1706 = vpop.f32.mrb[0].mxu0
    %1707 = vdwg.mxu0
    %v1708 = vadd.f32 %v1637, %v1705
    %v1709 = vxor.u32 %v1708, 2147483648
    %v1710 = vmul.f32 %v1709, 1.442695
    %v1711 = vpow.pop %v1710
    %v1712 = vadd.f32 %v1711, 1.0
    %v1713 = vrcp.pop %v1712
    %v1714 = vmul.f32 1.0, %v1713
    %1715 = vmatprep.subr.mxu0 0.0
    %1716 = vmatpush1.msra.mxu0 %v101
    %1717 = vmatprep.subr.mxu0 0.0
    %1718 = vmatpush1.msra.mxu0 %v102
    %1719 = vmatprep.subr.mxu0 0.0
    %1720 = vmatpush1.msra.mxu0 %v280
    %1721 = vmatprep.subr.mxu0 0.0
    %1722 = vmatpush1.msra.mxu0 0.0
    %1723 = vmatprep.subr.mxu0 0.0
    %1724 = vmatpush1.msra.mxu0 0.0
    %1725 = vmatprep.subr.mxu0 0.0
    %1726 = vmatpush1.msra.mxu0 0.0
    %1727 = vmatprep.subr.mxu0 0.0
    %1728 = vmatpush1.msra.mxu0 0.0
    %1729 = vmatprep.subr.mxu0 0.0
    %1730 = vmatpush1.msra.mxu0 0.0
    %1731 = vmatprep.subr.mxu0 0.0
    %1732 = vmatpush1.msra.mxu0 0.0
    %1733 = vmatprep.subr.mxu0 0.0
    %1734 = vmatpush1.msra.mxu0 0.0
    %1735 = vmatprep.subr.mxu0 0.0
    %1736 = vmatpush1.msra.mxu0 0.0
    %1737 = vmatprep.subr.mxu0 0.0
    %1738 = vmatpush1.msra.mxu0 0.0
    %1739 = vmatprep.subr.mxu0 0.0
    %1740 = vmatpush1.msra.mxu0 0.0
    %1741 = vmatprep.subr.mxu0 0.0
    %1742 = vmatpush1.msra.mxu0 0.0
    %1743 = vmatprep.subr.mxu0 0.0
    %1744 = vmatpush1.msra.mxu0 0.0
    %1745 = vmatprep.subr.mxu0 0.0
    %1746 = vmatpush1.msra.mxu0 0.0
    %1747 = vmatprep.subr.mxu0 0.0
    %1748 = vmatpush1.msra.mxu0 0.0
    %1749 = vmatprep.subr.mxu0 0.0
    %1750 = vmatpush1.msra.mxu0 0.0
    %1751 = vmatprep.subr.mxu0 0.0
    %1752 = vmatpush1.msra.mxu0 0.0
    %1753 = vmatprep.subr.mxu0 0.0
    %1754 = vmatpush1.msra.mxu0 0.0
    %1755 = vmatprep.subr.mxu0 0.0
    %1756 = vmatpush1.msra.mxu0 0.0
    %1757 = vmatprep.subr.mxu0 0.0
    %1758 = vmatpush1.msra.mxu0 0.0
    %1759 = vmatprep.subr.mxu0 0.0
    %1760 = vmatpush1.msra.mxu0 0.0
    %1761 = vmatprep.subr.mxu0 0.0
    %1762 = vmatpush1.msra.mxu0 0.0
    %1763 = vmatprep.subr.mxu0 0.0
    %1764 = vmatpush1.msra.mxu0 0.0
    %1765 = vmatprep.subr.mxu0 0.0
    %1766 = vmatpush1.msra.mxu0 0.0
    %1767 = vmatprep.subr.mxu0 0.0
    %1768 = vmatpush1.msra.mxu0 0.0
    %1769 = vmatprep.subr.mxu0 0.0
    %1770 = vmatpush1.msra.mxu0 0.0
    %1771 = vmatprep.subr.mxu0 0.0
    %1772 = vmatpush1.msra.mxu0 0.0
    %1773 = vmatprep.subr.mxu0 0.0
    %1774 = vmatpush1.msra.mxu0 0.0
    %1775 = vmatprep.subr.mxu0 0.0
    %1776 = vmatpush1.msra.mxu0 0.0
    %1777 = vmatprep.subr.mxu0 0.0
    %1778 = vmatpush1.msra.mxu0 0.0
    %1779 = vmatprep.mubr.f32.mxu0 0.0
    %1780 = vmatmul.mubr.f32.gmra.mrb[0].mxu0 %v1557
    %v1781 = vpop.f32.mrb[0].mxu0
    %v1782 = vadd.f32 %v277, %v1781
    %v1783 = vpop.f32.mrb[0].mxu0
    %1784 = vdwg.mxu0
    %s1785 = scalar_lea.vmem [#allocation8], 12
    %v1786 = vld [vmem:[%s1785] sm:$0x3]
    %v1787 = vmul.f32 %v1635, %v1782
    %v1788 = vadd.f32 %v1786, %v1787
    %v1789 = vtanh.pop %v1788
    %v1790 = vsub.f32 %v1553, %v1789
    %v1791 = vmul.f32 %v1714, %v1790
    %v1792 = vadd.f32 %v1789, %v1791
    %s1793 = scalar_lea.vmem [#allocation4], 14
    %v1794 = vld [vmem:[%s1793] sm:$0x3]
    %v1796 = vsel %vm107, %v1792, 0
    %1798 = vmatprep.subr.mxu0 0.0
    %1799 = vmatpush1.msra.mxu0 %v95
    %1800 = vmatprep.subr.mxu0 0.0
    %1801 = vmatpush1.msra.mxu0 %v96
    %1802 = vmatprep.subr.mxu0 0.0
    %1803 = vmatpush1.msra.mxu0 %v113
    %1804 = vmatprep.subr.mxu0 0.0
    %1805 = vmatpush1.msra.mxu0 0.0
    %1806 = vmatprep.subr.mxu0 0.0
    %1807 = vmatpush1.msra.mxu0 0.0
    %1808 = vmatprep.subr.mxu0 0.0
    %1809 = vmatpush1.msra.mxu0 0.0
    %1810 = vmatprep.subr.mxu0 0.0
    %1811 = vmatpush1.msra.mxu0 0.0
    %1812 = vmatprep.subr.mxu0 0.0
    %1813 = vmatpush1.msra.mxu0 0.0
    %1814 = vmatprep.subr.mxu0 0.0
    %1815 = vmatpush1.msra.mxu0 0.0
    %1816 = vmatprep.subr.mxu0 0.0
    %1817 = vmatpush1.msra.mxu0 0.0
    %1818 = vmatprep.subr.mxu0 0.0
    %1819 = vmatpush1.msra.mxu0 0.0
    %1820 = vmatprep.subr.mxu0 0.0
    %1821 = vmatpush1.msra.mxu0 0.0
    %1822 = vmatprep.subr.mxu0 0.0
    %1823 = vmatpush1.msra.mxu0 0.0
    %1824 = vmatprep.subr.mxu0 0.0
    %1825 = vmatpush1.msra.mxu0 0.0
    %1826 = vmatprep.subr.mxu0 0.0
    %1827 = vmatpush1.msra.mxu0 0.0
    %1828 = vmatprep.subr.mxu0 0.0
    %1829 = vmatpush1.msra.mxu0 0.0
    %1830 = vmatprep.subr.mxu0 0.0
    %1831 = vmatpush1.msra.mxu0 0.0
    %1832 = vmatprep.subr.mxu0 0.0
    %1833 = vmatpush1.msra.mxu0 0.0
    %1834 = vmatprep.subr.mxu0 0.0
    %1835 = vmatpush1.msra.mxu0 0.0
    %1836 = vmatprep.subr.mxu0 0.0
    %1837 = vmatpush1.msra.mxu0 0.0
    %1838 = vmatprep.subr.mxu0 0.0
    %1839 = vmatpush1.msra.mxu0 0.0
    %1840 = vmatprep.subr.mxu0 0.0
    %1841 = vmatpush1.msra.mxu0 0.0
    %1842 = vmatprep.subr.mxu0 0.0
    %1843 = vmatpush1.msra.mxu0 0.0
    %1844 = vmatprep.subr.mxu0 0.0
    %1845 = vmatpush1.msra.mxu0 0.0
    %1846 = vmatprep.subr.mxu0 0.0
    %1847 = vmatpush1.msra.mxu0 0.0
    %1848 = vmatprep.subr.mxu0 0.0
    %1849 = vmatpush1.msra.mxu0 0.0
    %1850 = vmatprep.subr.mxu0 0.0
    %1851 = vmatpush1.msra.mxu0 0.0
    %1852 = vmatprep.subr.mxu0 0.0
    %1853 = vmatpush1.msra.mxu0 0.0
    %1854 = vmatprep.subr.mxu0 0.0
    %1855 = vmatpush1.msra.mxu0 0.0
    %1856 = vmatprep.subr.mxu0 0.0
    %1857 = vmatpush1.msra.mxu0 0.0
    %1858 = vmatprep.subr.mxu0 0.0
    %1859 = vmatpush1.msra.mxu0 0.0
    %1860 = vmatprep.subr.mxu0 0.0
    %1861 = vmatpush1.msra.mxu0 0.0
    %1862 = vmatprep.mubr.f32.mxu0 0.0
    %1863 = vmatmul.mubr.f32.gmra.mrb[0].mxu0 %v1796
    %v1864 = vpop.f32.mrb[0].mxu0
    %v1865 = vadd.f32 0.0, %v1864
    %v1866 = vpop.f32.mrb[0].mxu0
    %1867 = vdwg.mxu0
    %v1868 = vadd.f32 %v1794, %v1865
    %v1869 = vxor.u32 %v1868, 2147483648
    %v1870 = vmul.f32 %v1869, 1.442695
    %v1871 = vpow.pop %v1870
    %v1872 = vadd.f32 %v1871, 1.0
    %v1873 = vrcp.pop %v1872
    %v1874 = vmul.f32 1.0, %v1873
    %s1875 = scalar_lea.vmem [#allocation6], 14
    %v1876 = vld [vmem:[%s1875] sm:$0x3]
    %1877 = vmatprep.subr.mxu0 0.0
    %1878 = vmatpush1.msra.mxu0 %v98
    %1879 = vmatprep.subr.mxu0 0.0
    %1880 = vmatpush1.msra.mxu0 %v99
    %1881 = vmatprep.subr.mxu0 0.0
    %1882 = vmatpush1.msra.mxu0 %v194
    %1883 = vmatprep.subr.mxu0 0.0
    %1884 = vmatpush1.msra.mxu0 0.0
    %1885 = vmatprep.subr.mxu0 0.0
    %1886 = vmatpush1.msra.mxu0 0.0
    %1887 = vmatprep.subr.mxu0 0.0
    %1888 = vmatpush1.msra.mxu0 0.0
    %1889 = vmatprep.subr.mxu0 0.0
    %1890 = vmatpush1.msra.mxu0 0.0
    %1891 = vmatprep.subr.mxu0 0.0
    %1892 = vmatpush1.msra.mxu0 0.0
    %1893 = vmatprep.subr.mxu0 0.0
    %1894 = vmatpush1.msra.mxu0 0.0
    %1895 = vmatprep.subr.mxu0 0.0
    %1896 = vmatpush1.msra.mxu0 0.0
    %1897 = vmatprep.subr.mxu0 0.0
    %1898 = vmatpush1.msra.mxu0 0.0
    %1899 = vmatprep.subr.mxu0 0.0
    %1900 = vmatpush1.msra.mxu0 0.0
    %1901 = vmatprep.subr.mxu0 0.0
    %1902 = vmatpush1.msra.mxu0 0.0
    %1903 = vmatprep.subr.mxu0 0.0
    %1904 = vmatpush1.msra.mxu0 0.0
    %1905 = vmatprep.subr.mxu0 0.0
    %1906 = vmatpush1.msra.mxu0 0.0
    %1907 = vmatprep.subr.mxu0 0.0
    %1908 = vmatpush1.msra.mxu0 0.0
    %1909 = vmatprep.subr.mxu0 0.0
    %1910 = vmatpush1.msra.mxu0 0.0
    %1911 = vmatprep.subr.mxu0 0.0
    %1912 = vmatpush1.msra.mxu0 0.0
    %1913 = vmatprep.subr.mxu0 0.0
    %1914 = vmatpush1.msra.mxu0 0.0
    %1915 = vmatprep.subr.mxu0 0.0
    %1916 = vmatpush1.msra.mxu0 0.0
    %1917 = vmatprep.subr.mxu0 0.0
    %1918 = vmatpush1.msra.mxu0 0.0
    %1919 = vmatprep.subr.mxu0 0.0
    %1920 = vmatpush1.msra.mxu0 0.0
    %1921 = vmatprep.subr.mxu0 0.0
    %1922 = vmatpush1.msra.mxu0 0.0
    %1923 = vmatprep.subr.mxu0 0.0
    %1924 = vmatpush1.msra.mxu0 0.0
    %1925 = vmatprep.subr.mxu0 0.0
    %1926 = vmatpush1.msra.mxu0 0.0
    %1927 = vmatprep.subr.mxu0 0.0
    %1928 = vmatpush1.msra.mxu0 0.0
    %1929 = vmatprep.subr.mxu0 0.0
    %1930 = vmatpush1.msra.mxu0 0.0
    %1931 = vmatprep.subr.mxu0 0.0
    %1932 = vmatpush1.msra.mxu0 0.0
    %1933 = vmatprep.subr.mxu0 0.0
    %1934 = vmatpush1.msra.mxu0 0.0
    %1935 = vmatprep.subr.mxu0 0.0
    %1936 = vmatpush1.msra.mxu0 0.0
    %1937 = vmatprep.subr.mxu0 0.0
    %1938 = vmatpush1.msra.mxu0 0.0
    %1939 = vmatprep.subr.mxu0 0.0
    %1940 = vmatpush1.msra.mxu0 0.0
    %1941 = vmatprep.mubr.f32.mxu0 0.0
    %1942 = vmatmul.mubr.f32.gmra.mrb[0].mxu0 %v1796
    %v1943 = vpop.f32.mrb[0].mxu0
    %v1944 = vadd.f32 0.0, %v1943
    %v1945 = vpop.f32.mrb[0].mxu0
    %1946 = vdwg.mxu0
    %v1947 = vadd.f32 %v1876, %v1944
    %v1948 = vxor.u32 %v1947, 2147483648
    %v1949 = vmul.f32 %v1948, 1.442695
    %v1950 = vpow.pop %v1949
    %v1951 = vadd.f32 %v1950, 1.0
    %v1952 = vrcp.pop %v1951
    %v1953 = vmul.f32 1.0, %v1952
    %1954 = vmatprep.subr.mxu0 0.0
    %1955 = vmatpush1.msra.mxu0 %v101
    %1956 = vmatprep.subr.mxu0 0.0
    %1957 = vmatpush1.msra.mxu0 %v102
    %1958 = vmatprep.subr.mxu0 0.0
    %1959 = vmatpush1.msra.mxu0 %v280
    %1960 = vmatprep.subr.mxu0 0.0
    %1961 = vmatpush1.msra.mxu0 0.0
    %1962 = vmatprep.subr.mxu0 0.0
    %1963 = vmatpush1.msra.mxu0 0.0
    %1964 = vmatprep.subr.mxu0 0.0
    %1965 = vmatpush1.msra.mxu0 0.0
    %1966 = vmatprep.subr.mxu0 0.0
    %1967 = vmatpush1.msra.mxu0 0.0
    %1968 = vmatprep.subr.mxu0 0.0
    %1969 = vmatpush1.msra.mxu0 0.0
    %1970 = vmatprep.subr.mxu0 0.0
    %1971 = vmatpush1.msra.mxu0 0.0
    %1972 = vmatprep.subr.mxu0 0.0
    %1973 = vmatpush1.msra.mxu0 0.0
    %1974 = vmatprep.subr.mxu0 0.0
    %1975 = vmatpush1.msra.mxu0 0.0
    %1976 = vmatprep.subr.mxu0 0.0
    %1977 = vmatpush1.msra.mxu0 0.0
    %1978 = vmatprep.subr.mxu0 0.0
    %1979 = vmatpush1.msra.mxu0 0.0
    %1980 = vmatprep.subr.mxu0 0.0
    %1981 = vmatpush1.msra.mxu0 0.0
    %1982 = vmatprep.subr.mxu0 0.0
    %1983 = vmatpush1.msra.mxu0 0.0
    %1984 = vmatprep.subr.mxu0 0.0
    %1985 = vmatpush1.msra.mxu0 0.0
    %1986 = vmatprep.subr.mxu0 0.0
    %1987 = vmatpush1.msra.mxu0 0.0
    %1988 = vmatprep.subr.mxu0 0.0
    %1989 = vmatpush1.msra.mxu0 0.0
    %1990 = vmatprep.subr.mxu0 0.0
    %1991 = vmatpush1.msra.mxu0 0.0
    %1992 = vmatprep.subr.mxu0 0.0
    %1993 = vmatpush1.msra.mxu0 0.0
    %1994 = vmatprep.subr.mxu0 0.0
    %1995 = vmatpush1.msra.mxu0 0.0
    %1996 = vmatprep.subr.mxu0 0.0
    %1997 = vmatpush1.msra.mxu0 0.0
    %1998 = vmatprep.subr.mxu0 0.0
    %1999 = vmatpush1.msra.mxu0 0.0
    %2000 = vmatprep.subr.mxu0 0.0
    %2001 = vmatpush1.msra.mxu0 0.0
    %2002 = vmatprep.subr.mxu0 0.0
    %2003 = vmatpush1.msra.mxu0 0.0
    %2004 = vmatprep.subr.mxu0 0.0
    %2005 = vmatpush1.msra.mxu0 0.0
    %2006 = vmatprep.subr.mxu0 0.0
    %2007 = vmatpush1.msra.mxu0 0.0
    %2008 = vmatprep.subr.mxu0 0.0
    %2009 = vmatpush1.msra.mxu0 0.0
    %2010 = vmatprep.subr.mxu0 0.0
    %2011 = vmatpush1.msra.mxu0 0.0
    %2012 = vmatprep.subr.mxu0 0.0
    %2013 = vmatpush1.msra.mxu0 0.0
    %2014 = vmatprep.subr.mxu0 0.0
    %2015 = vmatpush1.msra.mxu0 0.0
    %2016 = vmatprep.subr.mxu0 0.0
    %2017 = vmatpush1.msra.mxu0 0.0
    %2018 = vmatprep.mubr.f32.mxu0 0.0
    %2019 = vmatmul.mubr.f32.gmra.mrb[0].mxu0 %v1796
    %v2020 = vpop.f32.mrb[0].mxu0
    %v2021 = vadd.f32 %v277, %v2020
    %v2022 = vpop.f32.mrb[0].mxu0
    %2023 = vdwg.mxu0
    %s2024 = scalar_lea.vmem [#allocation8], 14
    %v2025 = vld [vmem:[%s2024] sm:$0x3]
    %v2026 = vmul.f32 %v1874, %v2021
    %v2027 = vadd.f32 %v2025, %v2026
    %v2028 = vtanh.pop %v2027
    %v2029 = vsub.f32 %v1792, %v2028
    %v2030 = vmul.f32 %v1953, %v2029
    %v2031 = vadd.f32 %v2028, %v2030
    %v2032 = vld [vmem:[%s8] sm:$0xff]
    %v2033 = vld [vmem:[%s8 + $0x8] sm:$0xff]
    %v2034 = vld [vmem:[%s8 + $0x10] sm:$0xf]
    %s2035 = sld [smem:[#allocation2]]
    %v2036 = vstv %s2035
    %v2038 = vsel %vm107, %v2031, 0
    %v2041 = vsel %vm111, %v2034, 0
    %2043 = vmatprep.subr.mxu0 0.0
    %2044 = vmatpush1.msra.mxu0 %v2032
    %2045 = vmatprep.subr.mxu0 0.0
    %2046 = vmatpush1.msra.mxu0 %v2033
    %2047 = vmatprep.subr.mxu0 0.0
    %2048 = vmatpush1.msra.mxu0 %v2041
    %2049 = vmatprep.subr.mxu0 0.0
    %2050 = vmatpush1.msra.mxu0 0.0
    %2051 = vmatprep.subr.mxu0 0.0
    %2052 = vmatpush1.msra.mxu0 0.0
    %2053 = vmatprep.subr.mxu0 0.0
    %2054 = vmatpush1.msra.mxu0 0.0
    %2055 = vmatprep.subr.mxu0 0.0
    %2056 = vmatpush1.msra.mxu0 0.0
    %2057 = vmatprep.subr.mxu0 0.0
    %2058 = vmatpush1.msra.mxu0 0.0
    %2059 = vmatprep.subr.mxu0 0.0
    %2060 = vmatpush1.msra.mxu0 0.0
    %2061 = vmatprep.subr.mxu0 0.0
    %2062 = vmatpush1.msra.mxu0 0.0
    %2063 = vmatprep.subr.mxu0 0.0
    %2064 = vmatpush1.msra.mxu0 0.0
    %2065 = vmatprep.subr.mxu0 0.0
    %2066 = vmatpush1.msra.mxu0 0.0
    %2067 = vmatprep.subr.mxu0 0.0
    %2068 = vmatpush1.msra.mxu0 0.0
    %2069 = vmatprep.subr.mxu0 0.0
    %2070 = vmatpush1.msra.mxu0 0.0
    %2071 = vmatprep.subr.mxu0 0.0
    %2072 = vmatpush1.msra.mxu0 0.0
    %2073 = vmatprep.subr.mxu0 0.0
    %2074 = vmatpush1.msra.mxu0 0.0
    %2075 = vmatprep.subr.mxu0 0.0
    %2076 = vmatpush1.msra.mxu0 0.0
    %2077 = vmatprep.subr.mxu0 0.0
    %2078 = vmatpush1.msra.mxu0 0.0
    %2079 = vmatprep.subr.mxu0 0.0
    %2080 = vmatpush1.msra.mxu0 0.0
    %2081 = vmatprep.subr.mxu0 0.0
    %2082 = vmatpush1.msra.mxu0 0.0
    %2083 = vmatprep.subr.mxu0 0.0
    %2084 = vmatpush1.msra.mxu0 0.0
    %2085 = vmatprep.subr.mxu0 0.0
    %2086 = vmatpush1.msra.mxu0 0.0
    %2087 = vmatprep.subr.mxu0 0.0
    %2088 = vmatpush1.msra.mxu0 0.0
    %2089 = vmatprep.subr.mxu0 0.0
    %2090 = vmatpush1.msra.mxu0 0.0
    %2091 = vmatprep.subr.mxu0 0.0
    %2092 = vmatpush1.msra.mxu0 0.0
    %2093 = vmatprep.subr.mxu0 0.0
    %2094 = vmatpush1.msra.mxu0 0.0
    %2095 = vmatprep.subr.mxu0 0.0
    %2096 = vmatpush1.msra.mxu0 0.0
    %2097 = vmatprep.subr.mxu0 0.0
    %2098 = vmatpush1.msra.mxu0 0.0
    %2099 = vmatprep.subr.mxu0 0.0
    %2100 = vmatpush1.msra.mxu0 0.0
    %2101 = vmatprep.subr.mxu0 0.0
    %2102 = vmatpush1.msra.mxu0 0.0
    %2103 = vmatprep.subr.mxu0 0.0
    %2104 = vmatpush1.msra.mxu0 0.0
    %2105 = vmatprep.subr.mxu0 0.0
    %2106 = vmatpush1.msra.mxu0 0.0
    %2107 = vmatprep.mubr.f32.mxu0 0.0
    %2108 = vmatmul.mubr.f32.gmra.mrb[0].mxu0 %v2038
    %v2109 = vpop.f32.mrb[0].mxu0
    %v2110 = vadd.f32 %v2036, %v2109
    %v2111 = vpop.f32.mrb[0].mxu0
    %2112 = vdwg.mxu0
    %s2113 = sld [smem:[#allocation3]]
    %vm2114 = vcmp.ge.f32.partialorder %v2110, 0.0
    %v2115 = vstv %s2113
    %v2116 = vmul.f32 %v2115, %v2110
    %v2117 = vsel %vm2114, %v2110, %v2116
    %vm2118 = vcmask 1024
    %2119 = vst.msk [vmem:[%s11] sm:$0x3] %vm2118, %v2117
    // Predicated region
    $region62: #{tpu_custom_call.1} parent=1 // pred_check
      _
    $region63: #{tpu_custom_call.1} parent=1 // pred_check_branch
      %2121 = sbr.rel (0) target = $region65
    $region64: #{tpu_custom_call.1} parent=1 // pred_region
      _
    $region65: #{tpu_custom_call.1} parent=1 // pred_fallthru
      _
    // Predicated region
    $region66: #{tpu_custom_call.1} parent=1 // pred_check
      _
    $region67: #{tpu_custom_call.1} parent=1 // pred_check_branch
      %2123 = sbr.rel (0) target = $region69
    $region68: #{tpu_custom_call.1} parent=1 // pred_region
      _
    $region69: #{tpu_custom_call.1} parent=1 // pred_fallthru
      _
    %2124 = vsyncpa [#allocation5], 1
    %2125 = vsyncpa [#allocation7], 1
    %2126 = vsyncpa [#allocation10], 1

</llo_original>
